<compile_context>
chip_gen: v7x
topology: tpu7x:2x2x1
jax: 0.10.0
libtpu: 0.0.40
codegen_flags: <defaults>
</compile_context>

<pallas_src>
import functools

import jax
import jax.numpy as jnp
import numpy as np
from jax.experimental import pallas as pl
from jax.experimental.pallas import tpu as pltpu

GN_GROUPS = 32
GN_EPS = 1e-5
LANE = 128


# --------------------------------------------------------------------------
# trace-time helpers (numpy, become constants)
# --------------------------------------------------------------------------
def _lerp_taps(in_size, out_size):
    """align_corners=True bilinear source taps: returns (i0, w1) python tuples."""
    if in_size == 1:
        return tuple([0] * out_size), tuple([0.0] * out_size)
    src = np.arange(out_size, dtype=np.float64) * (in_size - 1) / (out_size - 1)
    i0 = np.clip(np.floor(src).astype(np.int64), 0, in_size - 2)
    w1 = src - i0
    return tuple(int(v) for v in i0), tuple(float(v) for v in w1)


def _lerp_matrix(in_size, out_size):
    """(out_size, in_size) row-stochastic bilinear interp, align_corners=True."""
    i0, w1 = _lerp_taps(in_size, out_size)
    m = np.zeros((out_size, in_size), np.float32)
    for r in range(out_size):
        m[r, i0[r]] += 1.0 - w1[r]
        m[r, min(i0[r] + 1, in_size - 1)] += w1[r]
    return m


# --------------------------------------------------------------------------
# Pallas kernel: Conv3x3 + GroupNorm + ReLU (+ separable 2x bilinear upsample)
# for one batch element (grid over N).
# --------------------------------------------------------------------------
def _block_kernel(*refs, H, W, Cin, Cpad, cg, upsample, Ho, Wo, h_i0, h_w1):
    it = iter(refs)
    x_ref = next(it)                               # (1, H+2, W+2, Cin)  bf16
    w_ref = next(it)                               # (9, Cin, Cpad)      bf16
    g_ref = next(it)                               # (1, Cpad)           f32
    b_ref = next(it)                               # (1, Cpad)           f32
    B_ref = next(it) if cg > 1 else None           # (Cpad, Cpad)        f32
    uc_ref = next(it) if upsample else None        # (Wo, W)             bf16
    o_ref = next(it)                               # (1, Ho, Wo, Cpad)   bf16

    # ---- 3x3 conv (padding=1): 9 shifted-slice matmuls, f32 accumulation ----
    xh = x_ref[0]                                  # (H+2, W+2, Cin)
    acc = jnp.zeros((H * W, Cpad), jnp.float32)
    for k in range(9):
        dy, dx = k // 3, k % 3
        patch = xh[dy:dy + H, dx:dx + W, :].reshape(H * W, Cin)
        acc = acc + jnp.dot(patch, w_ref[k],
                            preferred_element_type=jnp.float32)

    # ---- GroupNorm(32) in f32 + ReLU ----
    mean_c = jnp.mean(acc, axis=0, keepdims=True)          # (1, Cpad)
    msq_c = jnp.mean(acc * acc, axis=0, keepdims=True)     # (1, Cpad)
    if cg > 1:
        mean_g = jnp.dot(mean_c, B_ref[...], preferred_element_type=jnp.float32)
        msq_g = jnp.dot(msq_c, B_ref[...], preferred_element_type=jnp.float32)
    else:  # one channel per group -> group stats == per-channel stats
        mean_g, msq_g = mean_c, msq_c
    inv = jax.lax.rsqrt(msq_g - mean_g * mean_g + GN_EPS)
    y = (acc - mean_g) * inv * g_ref[...] + b_ref[...]
    y = jnp.maximum(y, 0.0)                                 # (H*W, Cpad) f32

    if not upsample:
        o_ref[0] = y.reshape(H, W, Cpad).astype(o_ref.dtype)
        return

    # ---- separable bilinear 2x upsample (align_corners=True) ----
    # W direction: batched (over H) MXU matmul against the (Wo, W) matrix.
    y3 = y.reshape(H, W, Cpad).astype(jnp.bfloat16)
    ucb = jnp.broadcast_to(uc_ref[...][None], (H, Wo, W))
    u1 = jnp.einsum("hvw,hwc->hvc", ucb, y3,
                    preferred_element_type=jnp.float32)     # (H, Wo, Cpad)
    # H direction: statically-unrolled 2-tap lerp, stored row-by-row
    # (each store is a lane-dense (Wo, Cpad) slab).
    for r in range(Ho):
        i0 = h_i0[r]
        i1 = min(i0 + 1, H - 1)
        t = h_w1[r]
        row = u1[i0] * (1.0 - t) + u1[i1] * t               # (Wo, Cpad) f32
        o_ref[0, r] = row.astype(o_ref.dtype)


# --------------------------------------------------------------------------
# Per-block wrapper
# --------------------------------------------------------------------------
def conv3x3_gn_relu_block(x_nhwc, w_oihw, gamma, beta, upsample):
    """x_nhwc: (N, H, W, Cin); w_oihw: (Cout, Cin, 3, 3).

    Returns (N, Ho, Wo, Cpad) bf16 with channels zero-padded to Cpad.
    """
    N, H, W, Cin = x_nhwc.shape
    Cout = w_oihw.shape[0]
    assert Cout % GN_GROUPS == 0, "GroupNorm(32, C) requires C % 32 == 0"
    assert w_oihw.shape[1] == Cin
    cg = Cout // GN_GROUPS
    Cpad = ((Cout + LANE - 1) // LANE) * LANE      # lane-dense channels / wide MXU N
    Ho, Wo = (2 * H, 2 * W) if upsample else (H, W)

    # conv weight (Cout, Cin, 3, 3) -> (9, Cin, Cpad), zero-padded output channels.
    wk = jnp.transpose(w_oihw, (2, 3, 1, 0)).reshape(9, Cin, Cout)
    wk = jnp.pad(wk, ((0, 0), (0, 0), (0, Cpad - Cout))).astype(jnp.bfloat16)
    g = jnp.pad(gamma.reshape(1, Cout).astype(jnp.float32),
                ((0, 0), (0, Cpad - Cout)))
    b = jnp.pad(beta.reshape(1, Cout).astype(jnp.float32),
                ((0, 0), (0, Cpad - Cout)))
    xp = jnp.pad(x_nhwc, ((0, 0), (1, 1), (1, 1), (0, 0))).astype(jnp.bfloat16)

    inputs = [xp, wk, g, b]
    in_specs = [
        pl.BlockSpec((1, H + 2, W + 2, Cin), lambda n: (n, 0, 0, 0)),
        pl.BlockSpec((9, Cin, Cpad), lambda n: (0, 0, 0)),
        pl.BlockSpec((1, Cpad), lambda n: (0, 0)),
        pl.BlockSpec((1, Cpad), lambda n: (0, 0)),
    ]
    if cg > 1:
        # Column-normalized block-diagonal group-averaging matrix; pad channels
        # get their own singleton groups so they never mix with real channels.
        gidx = np.concatenate([np.arange(Cout) // cg,
                               GN_GROUPS + np.arange(Cpad - Cout)])
        eq = (gidx[:, None] == gidx[None, :]).astype(np.float32)
        Bmat = eq / eq.sum(axis=0, keepdims=True)
        inputs.append(jnp.asarray(Bmat))
        in_specs.append(pl.BlockSpec((Cpad, Cpad), lambda n: (0, 0)))

    h_i0, h_w1 = (), ()
    if upsample:
        inputs.append(jnp.asarray(_lerp_matrix(W, Wo), jnp.bfloat16))
        in_specs.append(pl.BlockSpec((Wo, W), lambda n: (0, 0)))
        h_i0, h_w1 = _lerp_taps(H, Ho)

    kernel = functools.partial(
        _block_kernel, H=H, W=W, Cin=Cin, Cpad=Cpad, cg=cg,
        upsample=upsample, Ho=Ho, Wo=Wo, h_i0=h_i0, h_w1=h_w1)

    # TODO(synk): for large images add a spatial (row) grid axis with a
    # manually-DMA'd halo, and fuse the whole block chain into one pallas_call
    # so inter-block activations never round-trip through HBM.
    out = pl.pallas_call(
        kernel,
        out_shape=jax.ShapeDtypeStruct((N, Ho, Wo, Cpad), jnp.bfloat16),
        grid=(N,),
        in_specs=in_specs,
        out_specs=pl.BlockSpec((1, Ho, Wo, Cpad), lambda n: (n, 0, 0, 0)),
        compiler_params=pltpu.CompilerParams(
            dimension_semantics=("parallel",),
            vmem_limit_bytes=32 * 1024 * 1024),
    )(*inputs)
    return out


# --------------------------------------------------------------------------
# SegmentationBlock forward (NCHW in/out, like PyTorch)
# --------------------------------------------------------------------------
def segmentation_block_forward(x_nchw, params, n_upsamples):
    """params: list of (conv_w (Cout, Cin, 3, 3), gamma (Cout,), beta (Cout,))."""
    Cout = params[0][0].shape[0]
    x = jnp.transpose(x_nchw, (0, 2, 3, 1))        # NCHW -> NHWC
    for i, (w, g, b) in enumerate(params):
        up = bool(n_upsamples) if i == 0 else True
        cin_act = x.shape[-1]
        if w.shape[1] != cin_act:                  # activations carry lane padding
            w = jnp.pad(w, ((0, 0), (0, cin_act - w.shape[1]), (0, 0), (0, 0)))
        x = conv3x3_gn_relu_block(x, w, g, b, upsample=up)
    x = x[..., :Cout].astype(jnp.float32)          # drop channel padding once
    return jnp.transpose(x, (0, 3, 1, 2))          # NHWC -> NCHW


def init_params(key, in_channels, out_channels, n_upsamples):
    n_blocks = max(1, n_upsamples)
    params = []
    cin = in_channels
    for _ in range(n_blocks):
        key, wk = jax.random.split(key)
        fan_in = cin * 9
        w = jax.random.normal(wk, (out_channels, cin, 3, 3), jnp.float32) / jnp.sqrt(fan_in)
        gamma = jnp.ones((out_channels,), jnp.float32)   # PyTorch GroupNorm default
        beta = jnp.zeros((out_channels,), jnp.float32)
        params.append((w, gamma, beta))
        cin = out_channels
    return params


if __name__ == "__main__":
    key = jax.random.PRNGKey(0)
    N, Cin, H, W = 2, 16, 8, 8
    Cout = 32            # must be divisible by 32 for GroupNorm(32, C)
    n_upsamples = 2      # two Conv3x3GNReLU blocks, both with 2x upsample

    key, xk = jax.random.split(key)
    x = jax.random.normal(xk, (N, Cin, H, W), jnp.float32)  # NCHW, like PyTorch

    params = init_params(key, Cin, Cout, n_upsamples)

    out = segmentation_block_forward(x, params, n_upsamples)
    out = jax.block_until_ready(out)

    expected_shape = (N, Cout, H * (2 ** n_upsamples), W * (2 ** n_upsamples))
    assert out.shape == expected_shape, (out.shape, expected_shape)
    assert bool(jnp.all(jnp.isfinite(out)))
    assert bool(jnp.all(out >= 0.0))  # ReLU output upsampled with nonneg weights
    print("KERNEL_OK")
</pallas_src>

<mosaic_0001>
module attributes {stable_mosaic.version = 11 : i64} {
  func.func @_block_kernel(%arg0: i32, %arg1: memref<1x10x10x16xbf16, #tpu.memory_space<vmem>>, %arg2: memref<9x16x128xbf16, #tpu.memory_space<vmem>>, %arg3: memref<1x128xf32, #tpu.memory_space<vmem>>, %arg4: memref<1x128xf32, #tpu.memory_space<vmem>>, %arg5: memref<16x8xbf16, #tpu.memory_space<vmem>>, %arg6: memref<1x16x16x128xbf16, #tpu.memory_space<vmem>>) attributes {dimension_semantics = [#tpu.dimension_semantics<parallel>], iteration_bounds = array<i64: 2>, scalar_prefetch = 0 : i64, scratch_operands = 0 : i64, tpu.core_type = #tpu.core_type<tc>, window_params = [{transform_indices = @transform_0, window_bounds = array<i64: 1, 10, 10, 16>}, {pipeline_mode = #tpu.pipeline_mode<synchronous>, transform_indices = @transform_1, window_bounds = array<i64: 9, 16, 128>}, {pipeline_mode = #tpu.pipeline_mode<synchronous>, transform_indices = @transform_2, window_bounds = array<i64: 1, 128>}, {pipeline_mode = #tpu.pipeline_mode<synchronous>, transform_indices = @transform_3, window_bounds = array<i64: 1, 128>}, {pipeline_mode = #tpu.pipeline_mode<synchronous>, transform_indices = @transform_4, window_bounds = array<i64: 16, 8>}, {transform_indices = @transform_5, window_bounds = array<i64: 1, 16, 16, 128>}]} {
    %c0 = arith.constant 0 : index
    %c0_0 = arith.constant 0 : index
    %c0_1 = arith.constant 0 : index
    %c0_2 = arith.constant 0 : index
    %0 = vector.load %arg1[%c0, %c0_0, %c0_1, %c0_2] : memref<1x10x10x16xbf16, #tpu.memory_space<vmem>>, vector<1x10x10x16xbf16>
    %1 = vector.shape_cast %0 : vector<1x10x10x16xbf16> to vector<10x10x16xbf16>
    %cst = arith.constant 0.000000e+00 : f32
    %2 = vector.broadcast %cst : f32 to vector<64x128xf32>
    %3 = vector.extract_strided_slice %1 {offsets = [0, 0, 0], sizes = [8, 8, 16], strides = [1, 1, 1]} : vector<10x10x16xbf16> to vector<8x8x16xbf16>
    %4 = vector.shape_cast %3 : vector<8x8x16xbf16> to vector<64x16xbf16>
    %c0_3 = arith.constant 0 : index
    %c0_4 = arith.constant 0 : index
    %c0_5 = arith.constant 0 : index
    %5 = vector.load %arg2[%c0_3, %c0_4, %c0_5] : memref<9x16x128xbf16, #tpu.memory_space<vmem>>, vector<1x16x128xbf16>
    %6 = vector.shape_cast %5 : vector<1x16x128xbf16> to vector<16x128xbf16>
    %cst_6 = arith.constant dense<0.000000e+00> : vector<64x128xf32>
    %7 = tpu.matmul %4, %6, %cst_6 {dimension_numbers = #tpu.dot_dimension_numbers<[1], [0], [0], [1], [0, 0, 1, 1], [], []>} : vector<64x16xbf16>, vector<16x128xbf16>, vector<64x128xf32> -> vector<64x128xf32>
    %8 = arith.addf %2, %7 : vector<64x128xf32>
    %9 = vector.extract_strided_slice %1 {offsets = [0, 1, 0], sizes = [8, 8, 16], strides = [1, 1, 1]} : vector<10x10x16xbf16> to vector<8x8x16xbf16>
    %10 = vector.shape_cast %9 : vector<8x8x16xbf16> to vector<64x16xbf16>
    %c1 = arith.constant 1 : index
    %c0_7 = arith.constant 0 : index
    %c0_8 = arith.constant 0 : index
    %11 = vector.load %arg2[%c1, %c0_7, %c0_8] : memref<9x16x128xbf16, #tpu.memory_space<vmem>>, vector<1x16x128xbf16>
    %12 = vector.shape_cast %11 : vector<1x16x128xbf16> to vector<16x128xbf16>
    %cst_9 = arith.constant dense<0.000000e+00> : vector<64x128xf32>
    %13 = tpu.matmul %10, %12, %cst_9 {dimension_numbers = #tpu.dot_dimension_numbers<[1], [0], [0], [1], [0, 0, 1, 1], [], []>} : vector<64x16xbf16>, vector<16x128xbf16>, vector<64x128xf32> -> vector<64x128xf32>
    %14 = arith.addf %8, %13 : vector<64x128xf32>
    %15 = vector.extract_strided_slice %1 {offsets = [0, 2, 0], sizes = [8, 8, 16], strides = [1, 1, 1]} : vector<10x10x16xbf16> to vector<8x8x16xbf16>
    %16 = vector.shape_cast %15 : vector<8x8x16xbf16> to vector<64x16xbf16>
    %c2 = arith.constant 2 : index
    %c0_10 = arith.constant 0 : index
    %c0_11 = arith.constant 0 : index
    %17 = vector.load %arg2[%c2, %c0_10, %c0_11] : memref<9x16x128xbf16, #tpu.memory_space<vmem>>, vector<1x16x128xbf16>
    %18 = vector.shape_cast %17 : vector<1x16x128xbf16> to vector<16x128xbf16>
    %cst_12 = arith.constant dense<0.000000e+00> : vector<64x128xf32>
    %19 = tpu.matmul %16, %18, %cst_12 {dimension_numbers = #tpu.dot_dimension_numbers<[1], [0], [0], [1], [0, 0, 1, 1], [], []>} : vector<64x16xbf16>, vector<16x128xbf16>, vector<64x128xf32> -> vector<64x128xf32>
    %20 = arith.addf %14, %19 : vector<64x128xf32>
    %21 = vector.extract_strided_slice %1 {offsets = [1, 0, 0], sizes = [8, 8, 16], strides = [1, 1, 1]} : vector<10x10x16xbf16> to vector<8x8x16xbf16>
    %22 = vector.shape_cast %21 : vector<8x8x16xbf16> to vector<64x16xbf16>
    %c3 = arith.constant 3 : index
    %c0_13 = arith.constant 0 : index
    %c0_14 = arith.constant 0 : index
    %23 = vector.load %arg2[%c3, %c0_13, %c0_14] : memref<9x16x128xbf16, #tpu.memory_space<vmem>>, vector<1x16x128xbf16>
    %24 = vector.shape_cast %23 : vector<1x16x128xbf16> to vector<16x128xbf16>
    %cst_15 = arith.constant dense<0.000000e+00> : vector<64x128xf32>
    %25 = tpu.matmul %22, %24, %cst_15 {dimension_numbers = #tpu.dot_dimension_numbers<[1], [0], [0], [1], [0, 0, 1, 1], [], []>} : vector<64x16xbf16>, vector<16x128xbf16>, vector<64x128xf32> -> vector<64x128xf32>
    %26 = arith.addf %20, %25 : vector<64x128xf32>
    %27 = vector.extract_strided_slice %1 {offsets = [1, 1, 0], sizes = [8, 8, 16], strides = [1, 1, 1]} : vector<10x10x16xbf16> to vector<8x8x16xbf16>
    %28 = vector.shape_cast %27 : vector<8x8x16xbf16> to vector<64x16xbf16>
    %c4 = arith.constant 4 : index
    %c0_16 = arith.constant 0 : index
    %c0_17 = arith.constant 0 : index
    %29 = vector.load %arg2[%c4, %c0_16, %c0_17] : memref<9x16x128xbf16, #tpu.memory_space<vmem>>, vector<1x16x128xbf16>
    %30 = vector.shape_cast %29 : vector<1x16x128xbf16> to vector<16x128xbf16>
    %cst_18 = arith.constant dense<0.000000e+00> : vector<64x128xf32>
    %31 = tpu.matmul %28, %30, %cst_18 {dimension_numbers = #tpu.dot_dimension_numbers<[1], [0], [0], [1], [0, 0, 1, 1], [], []>} : vector<64x16xbf16>, vector<16x128xbf16>, vector<64x128xf32> -> vector<64x128xf32>
    %32 = arith.addf %26, %31 : vector<64x128xf32>
    %33 = vector.extract_strided_slice %1 {offsets = [1, 2, 0], sizes = [8, 8, 16], strides = [1, 1, 1]} : vector<10x10x16xbf16> to vector<8x8x16xbf16>
    %34 = vector.shape_cast %33 : vector<8x8x16xbf16> to vector<64x16xbf16>
    %c5 = arith.constant 5 : index
    %c0_19 = arith.constant 0 : index
    %c0_20 = arith.constant 0 : index
    %35 = vector.load %arg2[%c5, %c0_19, %c0_20] : memref<9x16x128xbf16, #tpu.memory_space<vmem>>, vector<1x16x128xbf16>
    %36 = vector.shape_cast %35 : vector<1x16x128xbf16> to vector<16x128xbf16>
    %cst_21 = arith.constant dense<0.000000e+00> : vector<64x128xf32>
    %37 = tpu.matmul %34, %36, %cst_21 {dimension_numbers = #tpu.dot_dimension_numbers<[1], [0], [0], [1], [0, 0, 1, 1], [], []>} : vector<64x16xbf16>, vector<16x128xbf16>, vector<64x128xf32> -> vector<64x128xf32>
    %38 = arith.addf %32, %37 : vector<64x128xf32>
    %39 = vector.extract_strided_slice %1 {offsets = [2, 0, 0], sizes = [8, 8, 16], strides = [1, 1, 1]} : vector<10x10x16xbf16> to vector<8x8x16xbf16>
    %40 = vector.shape_cast %39 : vector<8x8x16xbf16> to vector<64x16xbf16>
    %c6 = arith.constant 6 : index
    %c0_22 = arith.constant 0 : index
    %c0_23 = arith.constant 0 : index
    %41 = vector.load %arg2[%c6, %c0_22, %c0_23] : memref<9x16x128xbf16, #tpu.memory_space<vmem>>, vector<1x16x128xbf16>
    %42 = vector.shape_cast %41 : vector<1x16x128xbf16> to vector<16x128xbf16>
    %cst_24 = arith.constant dense<0.000000e+00> : vector<64x128xf32>
    %43 = tpu.matmul %40, %42, %cst_24 {dimension_numbers = #tpu.dot_dimension_numbers<[1], [0], [0], [1], [0, 0, 1, 1], [], []>} : vector<64x16xbf16>, vector<16x128xbf16>, vector<64x128xf32> -> vector<64x128xf32>
    %44 = arith.addf %38, %43 : vector<64x128xf32>
    %45 = vector.extract_strided_slice %1 {offsets = [2, 1, 0], sizes = [8, 8, 16], strides = [1, 1, 1]} : vector<10x10x16xbf16> to vector<8x8x16xbf16>
    %46 = vector.shape_cast %45 : vector<8x8x16xbf16> to vector<64x16xbf16>
    %c7 = arith.constant 7 : index
    %c0_25 = arith.constant 0 : index
    %c0_26 = arith.constant 0 : index
    %47 = vector.load %arg2[%c7, %c0_25, %c0_26] : memref<9x16x128xbf16, #tpu.memory_space<vmem>>, vector<1x16x128xbf16>
    %48 = vector.shape_cast %47 : vector<1x16x128xbf16> to vector<16x128xbf16>
    %cst_27 = arith.constant dense<0.000000e+00> : vector<64x128xf32>
    %49 = tpu.matmul %46, %48, %cst_27 {dimension_numbers = #tpu.dot_dimension_numbers<[1], [0], [0], [1], [0, 0, 1, 1], [], []>} : vector<64x16xbf16>, vector<16x128xbf16>, vector<64x128xf32> -> vector<64x128xf32>
    %50 = arith.addf %44, %49 : vector<64x128xf32>
    %51 = vector.extract_strided_slice %1 {offsets = [2, 2, 0], sizes = [8, 8, 16], strides = [1, 1, 1]} : vector<10x10x16xbf16> to vector<8x8x16xbf16>
    %52 = vector.shape_cast %51 : vector<8x8x16xbf16> to vector<64x16xbf16>
    %c8 = arith.constant 8 : index
    %c0_28 = arith.constant 0 : index
    %c0_29 = arith.constant 0 : index
    %53 = vector.load %arg2[%c8, %c0_28, %c0_29] : memref<9x16x128xbf16, #tpu.memory_space<vmem>>, vector<1x16x128xbf16>
    %54 = vector.shape_cast %53 : vector<1x16x128xbf16> to vector<16x128xbf16>
    %cst_30 = arith.constant dense<0.000000e+00> : vector<64x128xf32>
    %55 = tpu.matmul %52, %54, %cst_30 {dimension_numbers = #tpu.dot_dimension_numbers<[1], [0], [0], [1], [0, 0, 1, 1], [], []>} : vector<64x16xbf16>, vector<16x128xbf16>, vector<64x128xf32> -> vector<64x128xf32>
    %56 = arith.addf %50, %55 : vector<64x128xf32>
    %cst_31 = arith.constant dense<0.000000e+00> : vector<128xf32>
    %57 = vector.multi_reduction <add>, %56, %cst_31 [0] : vector<64x128xf32> to vector<128xf32>
    %58 = vector.shape_cast %57 : vector<128xf32> to vector<1x128xf32>
    %cst_32 = arith.constant 6.400000e+01 : f32
    %59 = vector.broadcast %cst_32 : f32 to vector<1x128xf32>
    %60 = arith.divf %58, %59 : vector<1x128xf32>
    %61 = arith.mulf %56, %56 : vector<64x128xf32>
    %cst_33 = arith.constant dense<0.000000e+00> : vector<128xf32>
    %62 = vector.multi_reduction <add>, %61, %cst_33 [0] : vector<64x128xf32> to vector<128xf32>
    %63 = vector.shape_cast %62 : vector<128xf32> to vector<1x128xf32>
    %cst_34 = arith.constant 6.400000e+01 : f32
    %64 = vector.broadcast %cst_34 : f32 to vector<1x128xf32>
    %65 = arith.divf %63, %64 : vector<1x128xf32>
    %66 = arith.mulf %60, %60 : vector<1x128xf32>
    %67 = arith.subf %65, %66 : vector<1x128xf32>
    %cst_35 = arith.constant 9.99999974E-6 : f32
    %68 = vector.broadcast %cst_35 : f32 to vector<1x128xf32>
    %69 = arith.addf %67, %68 : vector<1x128xf32>
    %70 = math.rsqrt %69 : vector<1x128xf32>
    %71 = vector.broadcast %60 : vector<1x128xf32> to vector<64x128xf32>
    %72 = arith.subf %56, %71 : vector<64x128xf32>
    %73 = vector.broadcast %70 : vector<1x128xf32> to vector<64x128xf32>
    %74 = arith.mulf %72, %73 : vector<64x128xf32>
    %c0_36 = arith.constant 0 : index
    %c0_37 = arith.constant 0 : index
    %75 = vector.load %arg3[%c0_36, %c0_37] : memref<1x128xf32, #tpu.memory_space<vmem>>, vector<1x128xf32>
    %76 = vector.broadcast %75 : vector<1x128xf32> to vector<64x128xf32>
    %77 = arith.mulf %74, %76 : vector<64x128xf32>
    %c0_38 = arith.constant 0 : index
    %c0_39 = arith.constant 0 : index
    %78 = vector.load %arg4[%c0_38, %c0_39] : memref<1x128xf32, #tpu.memory_space<vmem>>, vector<1x128xf32>
    %79 = vector.broadcast %78 : vector<1x128xf32> to vector<64x128xf32>
    %80 = arith.addf %77, %79 : vector<64x128xf32>
    %cst_40 = arith.constant 0.000000e+00 : f32
    %81 = vector.broadcast %cst_40 : f32 to vector<64x128xf32>
    %82 = arith.maximumf %80, %81 : vector<64x128xf32>
    %83 = vector.shape_cast %82 : vector<64x128xf32> to vector<8x8x128xf32>
    %84 = arith.truncf %83 : vector<8x8x128xf32> to vector<8x8x128xbf16>
    %c0_41 = arith.constant 0 : index
    %c0_42 = arith.constant 0 : index
    %85 = vector.load %arg5[%c0_41, %c0_42] : memref<16x8xbf16, #tpu.memory_space<vmem>>, vector<16x8xbf16>
    %86 = vector.shape_cast %85 : vector<16x8xbf16> to vector<1x16x8xbf16>
    %87 = vector.shape_cast %86 : vector<1x16x8xbf16> to vector<1x16x8xbf16>
    %88 = vector.broadcast %87 : vector<1x16x8xbf16> to vector<8x16x8xbf16>
    "tpu.trace_start"() <{level = 10 : i32, message = "hvw,hwc->hvc"}> : () -> ()
    %cst_43 = arith.constant dense<0.000000e+00> : vector<8x16x128xf32>
    %89 = tpu.matmul %88, %84, %cst_43 {dimension_numbers = #tpu.dot_dimension_numbers<[2], [1], [1], [2], [0, 0, 0, 1, 1, 2], [0], [0]>} : vector<8x16x8xbf16>, vector<8x8x128xbf16>, vector<8x16x128xf32> -> vector<8x16x128xf32>
    "tpu.trace_stop"() : () -> ()
    %90 = vector.extract_strided_slice %89 {offsets = [0, 0, 0], sizes = [1, 16, 128], strides = [1, 1, 1]} : vector<8x16x128xf32> to vector<1x16x128xf32>
    %91 = vector.shape_cast %90 : vector<1x16x128xf32> to vector<16x128xf32>
    %cst_44 = arith.constant 1.000000e+00 : f32
    %92 = vector.broadcast %cst_44 : f32 to vector<16x128xf32>
    %93 = arith.mulf %91, %92 : vector<16x128xf32>
    %94 = vector.extract_strided_slice %89 {offsets = [1, 0, 0], sizes = [1, 16, 128], strides = [1, 1, 1]} : vector<8x16x128xf32> to vector<1x16x128xf32>
    %95 = vector.shape_cast %94 : vector<1x16x128xf32> to vector<16x128xf32>
    %cst_45 = arith.constant 0.000000e+00 : f32
    %96 = vector.broadcast %cst_45 : f32 to vector<16x128xf32>
    %97 = arith.mulf %95, %96 : vector<16x128xf32>
    %98 = arith.addf %93, %97 : vector<16x128xf32>
    %99 = arith.truncf %98 : vector<16x128xf32> to vector<16x128xbf16>
    %c0_46 = arith.constant 0 : index
    %c0_47 = arith.constant 0 : index
    %c0_48 = arith.constant 0 : index
    %c0_49 = arith.constant 0 : index
    %100 = vector.load %arg6[%c0_46, %c0_47, %c0_48, %c0_49] : memref<1x16x16x128xbf16, #tpu.memory_space<vmem>>, vector<1x1x16x128xbf16>
    %101 = vector.shape_cast %100 : vector<1x1x16x128xbf16> to vector<16x128xbf16>
    %102 = vector.shape_cast %99 : vector<16x128xbf16> to vector<1x1x16x128xbf16>
    tpu.vector_store %arg6[%c0_46, %c0_47, %c0_48, %c0_49], %102 {strides = array<i32>} : memref<1x16x16x128xbf16, #tpu.memory_space<vmem>>, vector<1x1x16x128xbf16>,
    %103 = vector.extract_strided_slice %89 {offsets = [0, 0, 0], sizes = [1, 16, 128], strides = [1, 1, 1]} : vector<8x16x128xf32> to vector<1x16x128xf32>
    %104 = vector.shape_cast %103 : vector<1x16x128xf32> to vector<16x128xf32>
    %cst_50 = arith.constant 0.533333361 : f32
    %105 = vector.broadcast %cst_50 : f32 to vector<16x128xf32>
    %106 = arith.mulf %104, %105 : vector<16x128xf32>
    %107 = vector.extract_strided_slice %89 {offsets = [1, 0, 0], sizes = [1, 16, 128], strides = [1, 1, 1]} : vector<8x16x128xf32> to vector<1x16x128xf32>
    %108 = vector.shape_cast %107 : vector<1x16x128xf32> to vector<16x128xf32>
    %cst_51 = arith.constant 0.466666669 : f32
    %109 = vector.broadcast %cst_51 : f32 to vector<16x128xf32>
    %110 = arith.mulf %108, %109 : vector<16x128xf32>
    %111 = arith.addf %106, %110 : vector<16x128xf32>
    %112 = arith.truncf %111 : vector<16x128xf32> to vector<16x128xbf16>
    %c0_52 = arith.constant 0 : index
    %c1_53 = arith.constant 1 : index
    %c0_54 = arith.constant 0 : index
    %c0_55 = arith.constant 0 : index
    %113 = vector.load %arg6[%c0_52, %c1_53, %c0_54, %c0_55] : memref<1x16x16x128xbf16, #tpu.memory_space<vmem>>, vector<1x1x16x128xbf16>
    %114 = vector.shape_cast %113 : vector<1x1x16x128xbf16> to vector<16x128xbf16>
    %115 = vector.shape_cast %112 : vector<16x128xbf16> to vector<1x1x16x128xbf16>
    tpu.vector_store %arg6[%c0_52, %c1_53, %c0_54, %c0_55], %115 {strides = array<i32>} : memref<1x16x16x128xbf16, #tpu.memory_space<vmem>>, vector<1x1x16x128xbf16>,
    %116 = vector.extract_strided_slice %89 {offsets = [0, 0, 0], sizes = [1, 16, 128], strides = [1, 1, 1]} : vector<8x16x128xf32> to vector<1x16x128xf32>
    %117 = vector.shape_cast %116 : vector<1x16x128xf32> to vector<16x128xf32>
    %cst_56 = arith.constant 0.0666666701 : f32
    %118 = vector.broadcast %cst_56 : f32 to vector<16x128xf32>
    %119 = arith.mulf %117, %118 : vector<16x128xf32>
    %120 = vector.extract_strided_slice %89 {offsets = [1, 0, 0], sizes = [1, 16, 128], strides = [1, 1, 1]} : vector<8x16x128xf32> to vector<1x16x128xf32>
    %121 = vector.shape_cast %120 : vector<1x16x128xf32> to vector<16x128xf32>
    %cst_57 = arith.constant 0.933333337 : f32
    %122 = vector.broadcast %cst_57 : f32 to vector<16x128xf32>
    %123 = arith.mulf %121, %122 : vector<16x128xf32>
    %124 = arith.addf %119, %123 : vector<16x128xf32>
    %125 = arith.truncf %124 : vector<16x128xf32> to vector<16x128xbf16>
    %c0_58 = arith.constant 0 : index
    %c2_59 = arith.constant 2 : index
    %c0_60 = arith.constant 0 : index
    %c0_61 = arith.constant 0 : index
    %126 = vector.load %arg6[%c0_58, %c2_59, %c0_60, %c0_61] : memref<1x16x16x128xbf16, #tpu.memory_space<vmem>>, vector<1x1x16x128xbf16>
    %127 = vector.shape_cast %126 : vector<1x1x16x128xbf16> to vector<16x128xbf16>
    %128 = vector.shape_cast %125 : vector<16x128xbf16> to vector<1x1x16x128xbf16>
    tpu.vector_store %arg6[%c0_58, %c2_59, %c0_60, %c0_61], %128 {strides = array<i32>} : memref<1x16x16x128xbf16, #tpu.memory_space<vmem>>, vector<1x1x16x128xbf16>,
    %129 = vector.extract_strided_slice %89 {offsets = [1, 0, 0], sizes = [1, 16, 128], strides = [1, 1, 1]} : vector<8x16x128xf32> to vector<1x16x128xf32>
    %130 = vector.shape_cast %129 : vector<1x16x128xf32> to vector<16x128xf32>
    %cst_62 = arith.constant 6.000000e-01 : f32
    %131 = vector.broadcast %cst_62 : f32 to vector<16x128xf32>
    %132 = arith.mulf %130, %131 : vector<16x128xf32>
    %133 = vector.extract_strided_slice %89 {offsets = [2, 0, 0], sizes = [1, 16, 128], strides = [1, 1, 1]} : vector<8x16x128xf32> to vector<1x16x128xf32>
    %134 = vector.shape_cast %133 : vector<1x16x128xf32> to vector<16x128xf32>
    %cst_63 = arith.constant 4.000000e-01 : f32
    %135 = vector.broadcast %cst_63 : f32 to vector<16x128xf32>
    %136 = arith.mulf %134, %135 : vector<16x128xf32>
    %137 = arith.addf %132, %136 : vector<16x128xf32>
    %138 = arith.truncf %137 : vector<16x128xf32> to vector<16x128xbf16>
    %c0_64 = arith.constant 0 : index
    %c3_65 = arith.constant 3 : index
    %c0_66 = arith.constant 0 : index
    %c0_67 = arith.constant 0 : index
    %139 = vector.load %arg6[%c0_64, %c3_65, %c0_66, %c0_67] : memref<1x16x16x128xbf16, #tpu.memory_space<vmem>>, vector<1x1x16x128xbf16>
    %140 = vector.shape_cast %139 : vector<1x1x16x128xbf16> to vector<16x128xbf16>
    %141 = vector.shape_cast %138 : vector<16x128xbf16> to vector<1x1x16x128xbf16>
    tpu.vector_store %arg6[%c0_64, %c3_65, %c0_66, %c0_67], %141 {strides = array<i32>} : memref<1x16x16x128xbf16, #tpu.memory_space<vmem>>, vector<1x1x16x128xbf16>,
    %142 = vector.extract_strided_slice %89 {offsets = [1, 0, 0], sizes = [1, 16, 128], strides = [1, 1, 1]} : vector<8x16x128xf32> to vector<1x16x128xf32>
    %143 = vector.shape_cast %142 : vector<1x16x128xf32> to vector<16x128xf32>
    %cst_68 = arith.constant 0.13333334 : f32
    %144 = vector.broadcast %cst_68 : f32 to vector<16x128xf32>
    %145 = arith.mulf %143, %144 : vector<16x128xf32>
    %146 = vector.extract_strided_slice %89 {offsets = [2, 0, 0], sizes = [1, 16, 128], strides = [1, 1, 1]} : vector<8x16x128xf32> to vector<1x16x128xf32>
    %147 = vector.shape_cast %146 : vector<1x16x128xf32> to vector<16x128xf32>
    %cst_69 = arith.constant 0.866666674 : f32
    %148 = vector.broadcast %cst_69 : f32 to vector<16x128xf32>
    %149 = arith.mulf %147, %148 : vector<16x128xf32>
    %150 = arith.addf %145, %149 : vector<16x128xf32>
    %151 = arith.truncf %150 : vector<16x128xf32> to vector<16x128xbf16>
    %c0_70 = arith.constant 0 : index
    %c4_71 = arith.constant 4 : index
    %c0_72 = arith.constant 0 : index
    %c0_73 = arith.constant 0 : index
    %152 = vector.load %arg6[%c0_70, %c4_71, %c0_72, %c0_73] : memref<1x16x16x128xbf16, #tpu.memory_space<vmem>>, vector<1x1x16x128xbf16>
    %153 = vector.shape_cast %152 : vector<1x1x16x128xbf16> to vector<16x128xbf16>
    %154 = vector.shape_cast %151 : vector<16x128xbf16> to vector<1x1x16x128xbf16>
    tpu.vector_store %arg6[%c0_70, %c4_71, %c0_72, %c0_73], %154 {strides = array<i32>} : memref<1x16x16x128xbf16, #tpu.memory_space<vmem>>, vector<1x1x16x128xbf16>,
    %155 = vector.extract_strided_slice %89 {offsets = [2, 0, 0], sizes = [1, 16, 128], strides = [1, 1, 1]} : vector<8x16x128xf32> to vector<1x16x128xf32>
    %156 = vector.shape_cast %155 : vector<1x16x128xf32> to vector<16x128xf32>
    %cst_74 = arith.constant 0.666666686 : f32
    %157 = vector.broadcast %cst_74 : f32 to vector<16x128xf32>
    %158 = arith.mulf %156, %157 : vector<16x128xf32>
    %159 = vector.extract_strided_slice %89 {offsets = [3, 0, 0], sizes = [1, 16, 128], strides = [1, 1, 1]} : vector<8x16x128xf32> to vector<1x16x128xf32>
    %160 = vector.shape_cast %159 : vector<1x16x128xf32> to vector<16x128xf32>
    %cst_75 = arith.constant 0.333333343 : f32
    %161 = vector.broadcast %cst_75 : f32 to vector<16x128xf32>
    %162 = arith.mulf %160, %161 : vector<16x128xf32>
    %163 = arith.addf %158, %162 : vector<16x128xf32>
    %164 = arith.truncf %163 : vector<16x128xf32> to vector<16x128xbf16>
    %c0_76 = arith.constant 0 : index
    %c5_77 = arith.constant 5 : index
    %c0_78 = arith.constant 0 : index
    %c0_79 = arith.constant 0 : index
    %165 = vector.load %arg6[%c0_76, %c5_77, %c0_78, %c0_79] : memref<1x16x16x128xbf16, #tpu.memory_space<vmem>>, vector<1x1x16x128xbf16>
    %166 = vector.shape_cast %165 : vector<1x1x16x128xbf16> to vector<16x128xbf16>
    %167 = vector.shape_cast %164 : vector<16x128xbf16> to vector<1x1x16x128xbf16>
    tpu.vector_store %arg6[%c0_76, %c5_77, %c0_78, %c0_79], %167 {strides = array<i32>} : memref<1x16x16x128xbf16, #tpu.memory_space<vmem>>, vector<1x1x16x128xbf16>,
    %168 = vector.extract_strided_slice %89 {offsets = [2, 0, 0], sizes = [1, 16, 128], strides = [1, 1, 1]} : vector<8x16x128xf32> to vector<1x16x128xf32>
    %169 = vector.shape_cast %168 : vector<1x16x128xf32> to vector<16x128xf32>
    %cst_80 = arith.constant 2.000000e-01 : f32
    %170 = vector.broadcast %cst_80 : f32 to vector<16x128xf32>
    %171 = arith.mulf %169, %170 : vector<16x128xf32>
    %172 = vector.extract_strided_slice %89 {offsets = [3, 0, 0], sizes = [1, 16, 128], strides = [1, 1, 1]} : vector<8x16x128xf32> to vector<1x16x128xf32>
    %173 = vector.shape_cast %172 : vector<1x16x128xf32> to vector<16x128xf32>
    %cst_81 = arith.constant 8.000000e-01 : f32
    %174 = vector.broadcast %cst_81 : f32 to vector<16x128xf32>
    %175 = arith.mulf %173, %174 : vector<16x128xf32>
    %176 = arith.addf %171, %175 : vector<16x128xf32>
    %177 = arith.truncf %176 : vector<16x128xf32> to vector<16x128xbf16>
    %c0_82 = arith.constant 0 : index
    %c6_83 = arith.constant 6 : index
    %c0_84 = arith.constant 0 : index
    %c0_85 = arith.constant 0 : index
    %178 = vector.load %arg6[%c0_82, %c6_83, %c0_84, %c0_85] : memref<1x16x16x128xbf16, #tpu.memory_space<vmem>>, vector<1x1x16x128xbf16>
    %179 = vector.shape_cast %178 : vector<1x1x16x128xbf16> to vector<16x128xbf16>
    %180 = vector.shape_cast %177 : vector<16x128xbf16> to vector<1x1x16x128xbf16>
    tpu.vector_store %arg6[%c0_82, %c6_83, %c0_84, %c0_85], %180 {strides = array<i32>} : memref<1x16x16x128xbf16, #tpu.memory_space<vmem>>, vector<1x1x16x128xbf16>,
    %181 = vector.extract_strided_slice %89 {offsets = [3, 0, 0], sizes = [1, 16, 128], strides = [1, 1, 1]} : vector<8x16x128xf32> to vector<1x16x128xf32>
    %182 = vector.shape_cast %181 : vector<1x16x128xf32> to vector<16x128xf32>
    %cst_86 = arith.constant 0.733333349 : f32
    %183 = vector.broadcast %cst_86 : f32 to vector<16x128xf32>
    %184 = arith.mulf %182, %183 : vector<16x128xf32>
    %185 = vector.extract_strided_slice %89 {offsets = [4, 0, 0], sizes = [1, 16, 128], strides = [1, 1, 1]} : vector<8x16x128xf32> to vector<1x16x128xf32>
    %186 = vector.shape_cast %185 : vector<1x16x128xf32> to vector<16x128xf32>
    %cst_87 = arith.constant 0.266666681 : f32
    %187 = vector.broadcast %cst_87 : f32 to vector<16x128xf32>
    %188 = arith.mulf %186, %187 : vector<16x128xf32>
    %189 = arith.addf %184, %188 : vector<16x128xf32>
    %190 = arith.truncf %189 : vector<16x128xf32> to vector<16x128xbf16>
    %c0_88 = arith.constant 0 : index
    %c7_89 = arith.constant 7 : index
    %c0_90 = arith.constant 0 : index
    %c0_91 = arith.constant 0 : index
    %191 = vector.load %arg6[%c0_88, %c7_89, %c0_90, %c0_91] : memref<1x16x16x128xbf16, #tpu.memory_space<vmem>>, vector<1x1x16x128xbf16>
    %192 = vector.shape_cast %191 : vector<1x1x16x128xbf16> to vector<16x128xbf16>
    %193 = vector.shape_cast %190 : vector<16x128xbf16> to vector<1x1x16x128xbf16>
    tpu.vector_store %arg6[%c0_88, %c7_89, %c0_90, %c0_91], %193 {strides = array<i32>} : memref<1x16x16x128xbf16, #tpu.memory_space<vmem>>, vector<1x1x16x128xbf16>,
    %194 = vector.extract_strided_slice %89 {offsets = [3, 0, 0], sizes = [1, 16, 128], strides = [1, 1, 1]} : vector<8x16x128xf32> to vector<1x16x128xf32>
    %195 = vector.shape_cast %194 : vector<1x16x128xf32> to vector<16x128xf32>
    %cst_92 = arith.constant 0.266666681 : f32
    %196 = vector.broadcast %cst_92 : f32 to vector<16x128xf32>
    %197 = arith.mulf %195, %196 : vector<16x128xf32>
    %198 = vector.extract_strided_slice %89 {offsets = [4, 0, 0], sizes = [1, 16, 128], strides = [1, 1, 1]} : vector<8x16x128xf32> to vector<1x16x128xf32>
    %199 = vector.shape_cast %198 : vector<1x16x128xf32> to vector<16x128xf32>
    %cst_93 = arith.constant 0.733333349 : f32
    %200 = vector.broadcast %cst_93 : f32 to vector<16x128xf32>
    %201 = arith.mulf %199, %200 : vector<16x128xf32>
    %202 = arith.addf %197, %201 : vector<16x128xf32>
    %203 = arith.truncf %202 : vector<16x128xf32> to vector<16x128xbf16>
    %c0_94 = arith.constant 0 : index
    %c8_95 = arith.constant 8 : index
    %c0_96 = arith.constant 0 : index
    %c0_97 = arith.constant 0 : index
    %204 = vector.load %arg6[%c0_94, %c8_95, %c0_96, %c0_97] : memref<1x16x16x128xbf16, #tpu.memory_space<vmem>>, vector<1x1x16x128xbf16>
    %205 = vector.shape_cast %204 : vector<1x1x16x128xbf16> to vector<16x128xbf16>
    %206 = vector.shape_cast %203 : vector<16x128xbf16> to vector<1x1x16x128xbf16>
    tpu.vector_store %arg6[%c0_94, %c8_95, %c0_96, %c0_97], %206 {strides = array<i32>} : memref<1x16x16x128xbf16, #tpu.memory_space<vmem>>, vector<1x1x16x128xbf16>,
    %207 = vector.extract_strided_slice %89 {offsets = [4, 0, 0], sizes = [1, 16, 128], strides = [1, 1, 1]} : vector<8x16x128xf32> to vector<1x16x128xf32>
    %208 = vector.shape_cast %207 : vector<1x16x128xf32> to vector<16x128xf32>
    %cst_98 = arith.constant 8.000000e-01 : f32
    %209 = vector.broadcast %cst_98 : f32 to vector<16x128xf32>
    %210 = arith.mulf %208, %209 : vector<16x128xf32>
    %211 = vector.extract_strided_slice %89 {offsets = [5, 0, 0], sizes = [1, 16, 128], strides = [1, 1, 1]} : vector<8x16x128xf32> to vector<1x16x128xf32>
    %212 = vector.shape_cast %211 : vector<1x16x128xf32> to vector<16x128xf32>
    %cst_99 = arith.constant 2.000000e-01 : f32
    %213 = vector.broadcast %cst_99 : f32 to vector<16x128xf32>
    %214 = arith.mulf %212, %213 : vector<16x128xf32>
    %215 = arith.addf %210, %214 : vector<16x128xf32>
    %216 = arith.truncf %215 : vector<16x128xf32> to vector<16x128xbf16>
    %c0_100 = arith.constant 0 : index
    %c9 = arith.constant 9 : index
    %c0_101 = arith.constant 0 : index
    %c0_102 = arith.constant 0 : index
    %217 = vector.load %arg6[%c0_100, %c9, %c0_101, %c0_102] : memref<1x16x16x128xbf16, #tpu.memory_space<vmem>>, vector<1x1x16x128xbf16>
    %218 = vector.shape_cast %217 : vector<1x1x16x128xbf16> to vector<16x128xbf16>
    %219 = vector.shape_cast %216 : vector<16x128xbf16> to vector<1x1x16x128xbf16>
    tpu.vector_store %arg6[%c0_100, %c9, %c0_101, %c0_102], %219 {strides = array<i32>} : memref<1x16x16x128xbf16, #tpu.memory_space<vmem>>, vector<1x1x16x128xbf16>,
    %220 = vector.extract_strided_slice %89 {offsets = [4, 0, 0], sizes = [1, 16, 128], strides = [1, 1, 1]} : vector<8x16x128xf32> to vector<1x16x128xf32>
    %221 = vector.shape_cast %220 : vector<1x16x128xf32> to vector<16x128xf32>
    %cst_103 = arith.constant 0.333333343 : f32
    %222 = vector.broadcast %cst_103 : f32 to vector<16x128xf32>
    %223 = arith.mulf %221, %222 : vector<16x128xf32>
    %224 = vector.extract_strided_slice %89 {offsets = [5, 0, 0], sizes = [1, 16, 128], strides = [1, 1, 1]} : vector<8x16x128xf32> to vector<1x16x128xf32>
    %225 = vector.shape_cast %224 : vector<1x16x128xf32> to vector<16x128xf32>
    %cst_104 = arith.constant 0.666666686 : f32
    %226 = vector.broadcast %cst_104 : f32 to vector<16x128xf32>
    %227 = arith.mulf %225, %226 : vector<16x128xf32>
    %228 = arith.addf %223, %227 : vector<16x128xf32>
    %229 = arith.truncf %228 : vector<16x128xf32> to vector<16x128xbf16>
    %c0_105 = arith.constant 0 : index
    %c10 = arith.constant 10 : index
    %c0_106 = arith.constant 0 : index
    %c0_107 = arith.constant 0 : index
    %230 = vector.load %arg6[%c0_105, %c10, %c0_106, %c0_107] : memref<1x16x16x128xbf16, #tpu.memory_space<vmem>>, vector<1x1x16x128xbf16>
    %231 = vector.shape_cast %230 : vector<1x1x16x128xbf16> to vector<16x128xbf16>
    %232 = vector.shape_cast %229 : vector<16x128xbf16> to vector<1x1x16x128xbf16>
    tpu.vector_store %arg6[%c0_105, %c10, %c0_106, %c0_107], %232 {strides = array<i32>} : memref<1x16x16x128xbf16, #tpu.memory_space<vmem>>, vector<1x1x16x128xbf16>,
    %233 = vector.extract_strided_slice %89 {offsets = [5, 0, 0], sizes = [1, 16, 128], strides = [1, 1, 1]} : vector<8x16x128xf32> to vector<1x16x128xf32>
    %234 = vector.shape_cast %233 : vector<1x16x128xf32> to vector<16x128xf32>
    %cst_108 = arith.constant 0.866666674 : f32
    %235 = vector.broadcast %cst_108 : f32 to vector<16x128xf32>
    %236 = arith.mulf %234, %235 : vector<16x128xf32>
    %237 = vector.extract_strided_slice %89 {offsets = [6, 0, 0], sizes = [1, 16, 128], strides = [1, 1, 1]} : vector<8x16x128xf32> to vector<1x16x128xf32>
    %238 = vector.shape_cast %237 : vector<1x16x128xf32> to vector<16x128xf32>
    %cst_109 = arith.constant 0.13333334 : f32
    %239 = vector.broadcast %cst_109 : f32 to vector<16x128xf32>
    %240 = arith.mulf %238, %239 : vector<16x128xf32>
    %241 = arith.addf %236, %240 : vector<16x128xf32>
    %242 = arith.truncf %241 : vector<16x128xf32> to vector<16x128xbf16>
    %c0_110 = arith.constant 0 : index
    %c11 = arith.constant 11 : index
    %c0_111 = arith.constant 0 : index
    %c0_112 = arith.constant 0 : index
    %243 = vector.load %arg6[%c0_110, %c11, %c0_111, %c0_112] : memref<1x16x16x128xbf16, #tpu.memory_space<vmem>>, vector<1x1x16x128xbf16>
    %244 = vector.shape_cast %243 : vector<1x1x16x128xbf16> to vector<16x128xbf16>
    %245 = vector.shape_cast %242 : vector<16x128xbf16> to vector<1x1x16x128xbf16>
    tpu.vector_store %arg6[%c0_110, %c11, %c0_111, %c0_112], %245 {strides = array<i32>} : memref<1x16x16x128xbf16, #tpu.memory_space<vmem>>, vector<1x1x16x128xbf16>,
    %246 = vector.extract_strided_slice %89 {offsets = [5, 0, 0], sizes = [1, 16, 128], strides = [1, 1, 1]} : vector<8x16x128xf32> to vector<1x16x128xf32>
    %247 = vector.shape_cast %246 : vector<1x16x128xf32> to vector<16x128xf32>
    %cst_113 = arith.constant 4.000000e-01 : f32
    %248 = vector.broadcast %cst_113 : f32 to vector<16x128xf32>
    %249 = arith.mulf %247, %248 : vector<16x128xf32>
    %250 = vector.extract_strided_slice %89 {offsets = [6, 0, 0], sizes = [1, 16, 128], strides = [1, 1, 1]} : vector<8x16x128xf32> to vector<1x16x128xf32>
    %251 = vector.shape_cast %250 : vector<1x16x128xf32> to vector<16x128xf32>
    %cst_114 = arith.constant 6.000000e-01 : f32
    %252 = vector.broadcast %cst_114 : f32 to vector<16x128xf32>
    %253 = arith.mulf %251, %252 : vector<16x128xf32>
    %254 = arith.addf %249, %253 : vector<16x128xf32>
    %255 = arith.truncf %254 : vector<16x128xf32> to vector<16x128xbf16>
    %c0_115 = arith.constant 0 : index
    %c12 = arith.constant 12 : index
    %c0_116 = arith.constant 0 : index
    %c0_117 = arith.constant 0 : index
    %256 = vector.load %arg6[%c0_115, %c12, %c0_116, %c0_117] : memref<1x16x16x128xbf16, #tpu.memory_space<vmem>>, vector<1x1x16x128xbf16>
    %257 = vector.shape_cast %256 : vector<1x1x16x128xbf16> to vector<16x128xbf16>
    %258 = vector.shape_cast %255 : vector<16x128xbf16> to vector<1x1x16x128xbf16>
    tpu.vector_store %arg6[%c0_115, %c12, %c0_116, %c0_117], %258 {strides = array<i32>} : memref<1x16x16x128xbf16, #tpu.memory_space<vmem>>, vector<1x1x16x128xbf16>,
    %259 = vector.extract_strided_slice %89 {offsets = [6, 0, 0], sizes = [1, 16, 128], strides = [1, 1, 1]} : vector<8x16x128xf32> to vector<1x16x128xf32>
    %260 = vector.shape_cast %259 : vector<1x16x128xf32> to vector<16x128xf32>
    %cst_118 = arith.constant 0.933333337 : f32
    %261 = vector.broadcast %cst_118 : f32 to vector<16x128xf32>
    %262 = arith.mulf %260, %261 : vector<16x128xf32>
    %263 = vector.extract_strided_slice %89 {offsets = [7, 0, 0], sizes = [1, 16, 128], strides = [1, 1, 1]} : vector<8x16x128xf32> to vector<1x16x128xf32>
    %264 = vector.shape_cast %263 : vector<1x16x128xf32> to vector<16x128xf32>
    %cst_119 = arith.constant 0.0666666701 : f32
    %265 = vector.broadcast %cst_119 : f32 to vector<16x128xf32>
    %266 = arith.mulf %264, %265 : vector<16x128xf32>
    %267 = arith.addf %262, %266 : vector<16x128xf32>
    %268 = arith.truncf %267 : vector<16x128xf32> to vector<16x128xbf16>
    %c0_120 = arith.constant 0 : index
    %c13 = arith.constant 13 : index
    %c0_121 = arith.constant 0 : index
    %c0_122 = arith.constant 0 : index
    %269 = vector.load %arg6[%c0_120, %c13, %c0_121, %c0_122] : memref<1x16x16x128xbf16, #tpu.memory_space<vmem>>, vector<1x1x16x128xbf16>
    %270 = vector.shape_cast %269 : vector<1x1x16x128xbf16> to vector<16x128xbf16>
    %271 = vector.shape_cast %268 : vector<16x128xbf16> to vector<1x1x16x128xbf16>
    tpu.vector_store %arg6[%c0_120, %c13, %c0_121, %c0_122], %271 {strides = array<i32>} : memref<1x16x16x128xbf16, #tpu.memory_space<vmem>>, vector<1x1x16x128xbf16>,
    %272 = vector.extract_strided_slice %89 {offsets = [6, 0, 0], sizes = [1, 16, 128], strides = [1, 1, 1]} : vector<8x16x128xf32> to vector<1x16x128xf32>
    %273 = vector.shape_cast %272 : vector<1x16x128xf32> to vector<16x128xf32>
    %cst_123 = arith.constant 0.466666669 : f32
    %274 = vector.broadcast %cst_123 : f32 to vector<16x128xf32>
    %275 = arith.mulf %273, %274 : vector<16x128xf32>
    %276 = vector.extract_strided_slice %89 {offsets = [7, 0, 0], sizes = [1, 16, 128], strides = [1, 1, 1]} : vector<8x16x128xf32> to vector<1x16x128xf32>
    %277 = vector.shape_cast %276 : vector<1x16x128xf32> to vector<16x128xf32>
    %cst_124 = arith.constant 0.533333361 : f32
    %278 = vector.broadcast %cst_124 : f32 to vector<16x128xf32>
    %279 = arith.mulf %277, %278 : vector<16x128xf32>
    %280 = arith.addf %275, %279 : vector<16x128xf32>
    %281 = arith.truncf %280 : vector<16x128xf32> to vector<16x128xbf16>
    %c0_125 = arith.constant 0 : index
    %c14 = arith.constant 14 : index
    %c0_126 = arith.constant 0 : index
    %c0_127 = arith.constant 0 : index
    %282 = vector.load %arg6[%c0_125, %c14, %c0_126, %c0_127] : memref<1x16x16x128xbf16, #tpu.memory_space<vmem>>, vector<1x1x16x128xbf16>
    %283 = vector.shape_cast %282 : vector<1x1x16x128xbf16> to vector<16x128xbf16>
    %284 = vector.shape_cast %281 : vector<16x128xbf16> to vector<1x1x16x128xbf16>
    tpu.vector_store %arg6[%c0_125, %c14, %c0_126, %c0_127], %284 {strides = array<i32>} : memref<1x16x16x128xbf16, #tpu.memory_space<vmem>>, vector<1x1x16x128xbf16>,
    %285 = vector.extract_strided_slice %89 {offsets = [6, 0, 0], sizes = [1, 16, 128], strides = [1, 1, 1]} : vector<8x16x128xf32> to vector<1x16x128xf32>
    %286 = vector.shape_cast %285 : vector<1x16x128xf32> to vector<16x128xf32>
    %cst_128 = arith.constant 0.000000e+00 : f32
    %287 = vector.broadcast %cst_128 : f32 to vector<16x128xf32>
    %288 = arith.mulf %286, %287 : vector<16x128xf32>
    %289 = vector.extract_strided_slice %89 {offsets = [7, 0, 0], sizes = [1, 16, 128], strides = [1, 1, 1]} : vector<8x16x128xf32> to vector<1x16x128xf32>
    %290 = vector.shape_cast %289 : vector<1x16x128xf32> to vector<16x128xf32>
    %cst_129 = arith.constant 1.000000e+00 : f32
    %291 = vector.broadcast %cst_129 : f32 to vector<16x128xf32>
    %292 = arith.mulf %290, %291 : vector<16x128xf32>
    %293 = arith.addf %288, %292 : vector<16x128xf32>
    %294 = arith.truncf %293 : vector<16x128xf32> to vector<16x128xbf16>
    %c0_130 = arith.constant 0 : index
    %c15 = arith.constant 15 : index
    %c0_131 = arith.constant 0 : index
    %c0_132 = arith.constant 0 : index
    %295 = vector.load %arg6[%c0_130, %c15, %c0_131, %c0_132] : memref<1x16x16x128xbf16, #tpu.memory_space<vmem>>, vector<1x1x16x128xbf16>
    %296 = vector.shape_cast %295 : vector<1x1x16x128xbf16> to vector<16x128xbf16>
    %297 = vector.shape_cast %294 : vector<16x128xbf16> to vector<1x1x16x128xbf16>
    tpu.vector_store %arg6[%c0_130, %c15, %c0_131, %c0_132], %297 {strides = array<i32>} : memref<1x16x16x128xbf16, #tpu.memory_space<vmem>>, vector<1x1x16x128xbf16>,
    return
  }
  func.func @transform_0(%arg0: i32) -> (i32, i32, i32, i32) {
    %c0_i32 = arith.constant 0 : i32
    %c0_i32_0 = arith.constant 0 : i32
    %c0_i32_1 = arith.constant 0 : i32
    %c0_i32_2 = arith.constant 0 : i32
    return %arg0, %c0_i32, %c0_i32_0, %c0_i32_1 : i32, i32, i32, i32
  }
  func.func @transform_1(%arg0: i32) -> (i32, i32, i32) {
    %c0_i32 = arith.constant 0 : i32
    %c0_i32_0 = arith.constant 0 : i32
    %c0_i32_1 = arith.constant 0 : i32
    %c0_i32_2 = arith.constant 0 : i32
    return %c0_i32, %c0_i32_0, %c0_i32_1 : i32, i32, i32
  }
  func.func @transform_2(%arg0: i32) -> (i32, i32) {
    %c0_i32 = arith.constant 0 : i32
    %c0_i32_0 = arith.constant 0 : i32
    %c0_i32_1 = arith.constant 0 : i32
    return %c0_i32, %c0_i32_0 : i32, i32
  }
  func.func @transform_3(%arg0: i32) -> (i32, i32) {
    %c0_i32 = arith.constant 0 : i32
    %c0_i32_0 = arith.constant 0 : i32
    %c0_i32_1 = arith.constant 0 : i32
    return %c0_i32, %c0_i32_0 : i32, i32
  }
  func.func @transform_4(%arg0: i32) -> (i32, i32) {
    %c0_i32 = arith.constant 0 : i32
    %c0_i32_0 = arith.constant 0 : i32
    %c0_i32_1 = arith.constant 0 : i32
    return %c0_i32, %c0_i32_0 : i32, i32
  }
  func.func @transform_5(%arg0: i32) -> (i32, i32, i32, i32) {
    %c0_i32 = arith.constant 0 : i32
    %c0_i32_0 = arith.constant 0 : i32
    %c0_i32_1 = arith.constant 0 : i32
    %c0_i32_2 = arith.constant 0 : i32
    return %arg0, %c0_i32, %c0_i32_0, %c0_i32_1 : i32, i32, i32, i32
  }
}

</mosaic_0001>

<llo_original>
// kernel: tpu_custom_call.1
$region0: #{tpu_custom_call.1}
  #allocation0 [shape = 'u32[]', space=smem, size = 0x4, offset = 0x4, fixed_abs, tag = 'smem constant byte address 0x4 - core index']
  #allocation1 [shape = 'u32[144,128]{1,0:T(1,128)}', space=vmem, size = 0x12000, scoped, tag = 'internal scratch']
  %s0 = inlined_call_operand.vmem [shape: bf16[2,10,10,16], index: 0, kind: input, shape index: {}]
  %s1 = inlined_call_operand.vmem [shape: bf16[9,16,128], index: 1, kind: input, shape index: {}]
  %s2 = inlined_call_operand.vmem [shape: f32[1,128], index: 2, kind: input, shape index: {}]
  %s3 = inlined_call_operand.vmem [shape: f32[1,128], index: 3, kind: input, shape index: {}]
  %s4 = inlined_call_operand.vmem [shape: bf16[16,8], index: 4, kind: input, shape index: {}]
  %s5 = inlined_call_operand.hbm [shape: bf16[2,16,16,128], index: 5, kind: output, shape index: {}]
  %s6 = sld [smem:[#allocation0]]
  $region53: #{tpu_custom_call.1} parent=0
    _
  %s8 = ssub.s32 1, %s6
  %s9 = scalar_select 0, %s8, %s6
  $region1: #{tpu_custom_call.1} parent=0
    #allocation2 [shape = 'u8[131072]{0}', space=vmem, size = 0x20000, scoped, tag = 'output window, operand 0']
    #allocation3 [shape = 's32[2]{0}', space=sflag, size = 0x8, scoped, tag = 'scoped memory for tpu_custom_call.1']
    %10 = vsyncpa [#allocation3], 0
    %s11 = scalar_lea.sflag [#allocation3], 1
    %12 = vsyncpa %s11, 0
    loop: start=0, step=1, limit=4
    $region2: #{tpu_custom_call.1} parent=1 // loop_pre_header
      _
    $region3: #{tpu_custom_call.1} parent=1 // loop_header
      %s14 = sphi 0, %s18
      %p15 = scmp.ge.s32.totalorder %s14, 4
      %s24 = sphi 0, %s26
      %s27 = sphi 0, %s24
      %s28 = sphi 0, %s27
      %s44 = sphi 0, %s28
      %s48 = sphi 0, %s48
      %s50 = sphi 0, %s48
      %s51 = sphi 0, %s50
      %s65 = sphi 0, %s51
      %s69 = sphi 0, %s69
      %s71 = sphi 0, %s69
      %s72 = sphi 0, %s71
      %s86 = sphi 0, %s72
      %s90 = sphi 0, %s90
      %s92 = sphi 0, %s90
      %s93 = sphi 0, %s92
      %s107 = sphi 0, %s93
      %s111 = sphi 0, %s111
      %s113 = sphi 0, %s111
      %s114 = sphi 0, %s113
      %s128 = sphi 0, %s114
      %s134 = sphi 0, %s136
      %s137 = sphi 0, %s134
      %s138 = sphi 0, %s137
      %s154 = sphi 0, %s138
    $region4: #{tpu_custom_call.1} parent=1 // loop_header_branch
      %17 = sbr.rel (%p15) target = $region8
    $region5: #{tpu_custom_call.1} parent=1 // loop_body
      %s19 = ssub.s32 %s14, 1
      %s20 = ssub.s32 %s14, 2
      %s21 = sadd.s32 %s14, 1
      %s22 = ssub.s32 %s14, %s21
      %p23 = scmp.eq.s32.totalorder %s22, 0
      %s25 = sadd.s32 %s24, 1
      %s26 = scalar_select %p23, %s24, %s25
      %p29 = pneg %p23
      %p30 = scmp.eq.s32.totalorder %s14, 1
      %p31 = por %p29, %p30
      %p32 = scmp.ne.s32.totalorder %s24, %s27
      %p33 = scmp.eq.s32.totalorder %s14, 0
      %p34 = por %p32, %p33
      %p35 = scmp.ne.s32.totalorder %s24, %s27
      %p36 = scmp.eq.s32.totalorder %s19, 1
      %p37 = por %p35, %p36
      %p38 = scmp.ne.s32.totalorder %s27, %s28
      %p39 = scmp.eq.s32.totalorder %s19, 0
      %p40 = por %p38, %p39
      %p41 = scmp.ne.s32.totalorder %s27, %s28
      %p42 = scmp.eq.s32.totalorder %s20, 1
      %p43 = por %p41, %p42
      %p45 = scmp.ne.s32.totalorder %s28, %s44
      %p46 = scmp.eq.s32.totalorder %s20, 0
      %p47 = por %p45, %p46
      %s49 = sadd.s32 %s48, 1
      %p52 = scmp.eq.s32.totalorder %s14, 1
      %p53 = scmp.ne.s32.totalorder %s48, %s50
      %p54 = scmp.eq.s32.totalorder %s14, 0
      %p55 = por %p53, %p54
      %p56 = scmp.ne.s32.totalorder %s48, %s50
      %p57 = scmp.eq.s32.totalorder %s19, 1
      %p58 = por %p56, %p57
      %p59 = scmp.ne.s32.totalorder %s50, %s51
      %p60 = scmp.eq.s32.totalorder %s19, 0
      %p61 = por %p59, %p60
      %p62 = scmp.ne.s32.totalorder %s50, %s51
      %p63 = scmp.eq.s32.totalorder %s20, 1
      %p64 = por %p62, %p63
      %p66 = scmp.ne.s32.totalorder %s51, %s65
      %p67 = scmp.eq.s32.totalorder %s20, 0
      %p68 = por %p66, %p67
      %s70 = sadd.s32 %s69, 1
      %p73 = scmp.eq.s32.totalorder %s14, 1
      %p74 = scmp.ne.s32.totalorder %s69, %s71
      %p75 = scmp.eq.s32.totalorder %s14, 0
      %p76 = por %p74, %p75
      %p77 = scmp.ne.s32.totalorder %s69, %s71
      %p78 = scmp.eq.s32.totalorder %s19, 1
      %p79 = por %p77, %p78
      %p80 = scmp.ne.s32.totalorder %s71, %s72
      %p81 = scmp.eq.s32.totalorder %s19, 0
      %p82 = por %p80, %p81
      %p83 = scmp.ne.s32.totalorder %s71, %s72
      %p84 = scmp.eq.s32.totalorder %s20, 1
      %p85 = por %p83, %p84
      %p87 = scmp.ne.s32.totalorder %s72, %s86
      %p88 = scmp.eq.s32.totalorder %s20, 0
      %p89 = por %p87, %p88
      %s91 = sadd.s32 %s90, 1
      %p94 = scmp.eq.s32.totalorder %s14, 1
      %p95 = scmp.ne.s32.totalorder %s90, %s92
      %p96 = scmp.eq.s32.totalorder %s14, 0
      %p97 = por %p95, %p96
      %p98 = scmp.ne.s32.totalorder %s90, %s92
      %p99 = scmp.eq.s32.totalorder %s19, 1
      %p100 = por %p98, %p99
      %p101 = scmp.ne.s32.totalorder %s92, %s93
      %p102 = scmp.eq.s32.totalorder %s19, 0
      %p103 = por %p101, %p102
      %p104 = scmp.ne.s32.totalorder %s92, %s93
      %p105 = scmp.eq.s32.totalorder %s20, 1
      %p106 = por %p104, %p105
      %p108 = scmp.ne.s32.totalorder %s93, %s107
      %p109 = scmp.eq.s32.totalorder %s20, 0
      %p110 = por %p108, %p109
      %s112 = sadd.s32 %s111, 1
      %p115 = scmp.eq.s32.totalorder %s14, 1
      %p116 = scmp.ne.s32.totalorder %s111, %s113
      %p117 = scmp.eq.s32.totalorder %s14, 0
      %p118 = por %p116, %p117
      %p119 = scmp.ne.s32.totalorder %s111, %s113
      %p120 = scmp.eq.s32.totalorder %s19, 1
      %p121 = por %p119, %p120
      %p122 = scmp.ne.s32.totalorder %s113, %s114
      %p123 = scmp.eq.s32.totalorder %s19, 0
      %p124 = por %p122, %p123
      %p125 = scmp.ne.s32.totalorder %s113, %s114
      %p126 = scmp.eq.s32.totalorder %s20, 1
      %p127 = por %p125, %p126
      %p129 = scmp.ne.s32.totalorder %s114, %s128
      %p130 = scmp.eq.s32.totalorder %s20, 0
      %p131 = por %p129, %p130
      %s132 = ssub.s32 %s14, %s21
      %p133 = scmp.eq.s32.totalorder %s132, 0
      %s135 = sadd.s32 %s134, 1
      %s136 = scalar_select %p133, %s134, %s135
      %p139 = pneg %p133
      %p140 = scmp.eq.s32.totalorder %s14, 1
      %p141 = por %p139, %p140
      %p142 = scmp.ne.s32.totalorder %s134, %s137
      %p143 = scmp.eq.s32.totalorder %s14, 0
      %p144 = por %p142, %p143
      %p145 = scmp.ne.s32.totalorder %s134, %s137
      %p146 = scmp.eq.s32.totalorder %s19, 1
      %p147 = por %p145, %p146
      %p148 = scmp.ne.s32.totalorder %s137, %s138
      %p149 = scmp.eq.s32.totalorder %s19, 0
      %p150 = por %p148, %p149
      %p151 = scmp.ne.s32.totalorder %s137, %s138
      %p152 = scmp.eq.s32.totalorder %s20, 1
      %p153 = por %p151, %p152
      %p155 = scmp.ne.s32.totalorder %s138, %s154
      %p156 = scmp.eq.s32.totalorder %s20, 0
      %p157 = por %p155, %p156
      %p158 = scmp.le.s32.totalorder 1, %s14
      %p159 = scmp.lt.s32.totalorder %s14, 3
      %p160 = pnand %p158, %p159
      %p161 = pneg %p160
      // Predicated region
      $region9: #{tpu_custom_call.1} parent=5 // pred_check
        _
      $region10: #{tpu_custom_call.1} parent=5 // pred_check_branch
        %163 = sbr.rel (%p160) target = $region12
      $region11: #{tpu_custom_call.1} parent=5 // pred_region
        %s164 = ssub.s32 %s14, 1
        // Predicated region
        $region13: #{tpu_custom_call.1} parent=11 // pred_check
          %p165 = pneg %p61
        $region14: #{tpu_custom_call.1} parent=11 // pred_check_branch
          %167 = sbr.rel (%p165) target = $region16
        $region15: #{tpu_custom_call.1} parent=11 // pred_region
          _
        $region16: #{tpu_custom_call.1} parent=11 // pred_fallthru
          _
        // Predicated region
        $region17: #{tpu_custom_call.1} parent=11 // pred_check
          %p168 = pneg %p82
        $region18: #{tpu_custom_call.1} parent=11 // pred_check_branch
          %170 = sbr.rel (%p168) target = $region20
        $region19: #{tpu_custom_call.1} parent=11 // pred_region
          _
        $region20: #{tpu_custom_call.1} parent=11 // pred_fallthru
          _
        // Predicated region
        $region21: #{tpu_custom_call.1} parent=11 // pred_check
          %p171 = pneg %p103
        $region22: #{tpu_custom_call.1} parent=11 // pred_check_branch
          %173 = sbr.rel (%p171) target = $region24
        $region23: #{tpu_custom_call.1} parent=11 // pred_region
          _
        $region24: #{tpu_custom_call.1} parent=11 // pred_fallthru
          _
        // Predicated region
        $region25: #{tpu_custom_call.1} parent=11 // pred_check
          %p174 = pneg %p124
        $region26: #{tpu_custom_call.1} parent=11 // pred_check_branch
          %176 = sbr.rel (%p174) target = $region28
        $region27: #{tpu_custom_call.1} parent=11 // pred_region
          _
        $region28: #{tpu_custom_call.1} parent=11 // pred_fallthru
          _
      $region12: #{tpu_custom_call.1} parent=5 // pred_fallthru
        _
      %p177 = scmp.lt.s32.totalorder %s14, 2
      // Predicated region
      $region29: #{tpu_custom_call.1} parent=5 // pred_check
        %p178 = pneg %p177
      $region30: #{tpu_custom_call.1} parent=5 // pred_check_branch
        %180 = sbr.rel (%p178) target = $region32
      $region31: #{tpu_custom_call.1} parent=5 // pred_region
        // Predicated region
        $region33: #{tpu_custom_call.1} parent=31 // pred_check
          %p181 = pneg %p34
        $region34: #{tpu_custom_call.1} parent=31 // pred_check_branch
          %183 = sbr.rel (%p181) target = $region36
        $region35: #{tpu_custom_call.1} parent=31 // pred_region
          %p184 = scmp.lt.s32.totalorder %s14, 1
          %s185 = scalar_select %p184, %s14, 1
          %s186 = smul.addr %s185, 20
          %s187 = smul.addr %s186, 4
          %s188 = scalar_lea.vmem %s0, %s187
        $region36: #{tpu_custom_call.1} parent=31 // pred_fallthru
          _
      $region32: #{tpu_custom_call.1} parent=5 // pred_fallthru
        _
      %p189 = scmp.le.s32.totalorder 1, %s14
      %p190 = scmp.lt.s32.totalorder %s14, 3
      %p191 = pnand %p189, %p190
      %p192 = pneg %p191
      // Predicated region
      $region37: #{tpu_custom_call.1} parent=5 // pred_check
        _
      $region38: #{tpu_custom_call.1} parent=5 // pred_check_branch
        %194 = sbr.rel (%p191) target = $region40
      $region39: #{tpu_custom_call.1} parent=5 // pred_region
        %s195 = ssub.s32 %s14, 1
        %p196 = scmp.lt.s32.totalorder %s19, 1
        %s197 = scalar_select %p196, %s19, 1
        %s198 = smul.addr %s197, 20
        %s199 = smul.addr %s198, 4
        %s200 = scalar_lea.vmem %s0, %s199
        %p201 = pneg %p40
        %p202 = pneg %p37
        %p203 = pneg %p61
        %p204 = pneg %p58
        %p205 = pneg %p82
        %p206 = pneg %p79
        %p207 = pneg %p103
        %p208 = pneg %p100
        %p209 = pneg %p124
        %p210 = pneg %p121
        %p211 = pneg %p150
        %p212 = pneg %p147
        %s213 = sand.u32 %s137, 1
        %s214 = scalar_lea.sflag [#allocation3], %s213
        %s215 = sand.u32 %s137, 1
        %s216 = smul.addr %s215, 128
        %s217 = scalar_lea.vmem [#allocation2], %s216
        %p218 = scmp.lt.s32.totalorder %s19, 1
        %s219 = scalar_select %p218, %s19, 1
        %s220 = smul.addr %s219, 20
        %s221 = smul.addr %s220, 4
        %s222 = scalar_lea.vmem %s0, %s221
        %v224 = vld [vmem:[%s222] sm:$0xf]
        %v225 = vld [vmem:[%s222 + $0x4] sm:$0x1]
        %v226 = vld [vmem:[%s222 + $0x8] sm:$0xf]
        %v227 = vld [vmem:[%s222 + $0xc] sm:$0x1]
        %v228 = vld [vmem:[%s222 + $0x10] sm:$0xf]
        %v229 = vld [vmem:[%s222 + $0x14] sm:$0x1]
        %v230 = vld [vmem:[%s222 + $0x18] sm:$0xf]
        %v231 = vld [vmem:[%s222 + $0x1c] sm:$0x1]
        %v232 = vld [vmem:[%s222 + $0x20] sm:$0xf]
        %v233 = vld [vmem:[%s222 + $0x24] sm:$0x1]
        %v234 = vld [vmem:[%s222 + $0x28] sm:$0xf]
        %v235 = vld [vmem:[%s222 + $0x2c] sm:$0x1]
        %v236 = vld [vmem:[%s222 + $0x30] sm:$0xf]
        %v237 = vld [vmem:[%s222 + $0x34] sm:$0x1]
        %v238 = vld [vmem:[%s222 + $0x38] sm:$0xf]
        %v239 = vld [vmem:[%s222 + $0x3c] sm:$0x1]
        %v240 = vld [vmem:[%s222 + $0x40] sm:$0xf]
        %v241 = vld [vmem:[%s222 + $0x44] sm:$0x1]
        %v242 = vld [vmem:[%s222 + $0x48] sm:$0xf]
        %v243 = vld [vmem:[%s222 + $0x4c] sm:$0x1]
        %v244 = vld [vmem:[%s1] sm:$0xf]
        %v245 = vld [vmem:[%s1 + $0x4] sm:$0xf]
        %vm246 = vsmask.f32 3328
        %vm247 = vsmask.f32 7440
        %vm248 = vmor %vm246, %vm247
        %v250 = vshrl.u32 %v224, 16
        %v252 = vrot.slane %v250, 4
        %v253 = vshll.u32 %v224, 16
        %v255 = vrot.slane %v253, 5
        %v256 = vor.u32 %v252, %v255
        %v257 = vrot.slane %v256, 4
        %v259 = vshll.u32 %v225, 16
        %v261 = vrot.slane %v259, 5
        %v262 = vsel %vm248, %v257, %v261
        %v264 = vshrl.u32 %v226, 16
        %v266 = vrot.slane %v264, 4
        %v267 = vshll.u32 %v226, 16
        %v269 = vrot.slane %v267, 5
        %v270 = vor.u32 %v266, %v269
        %v271 = vrot.slane %v270, 4
        %v273 = vshll.u32 %v227, 16
        %v275 = vrot.slane %v273, 5
        %v276 = vsel %vm248, %v271, %v275
        %v278 = vshrl.u32 %v228, 16
        %v280 = vrot.slane %v278, 4
        %v281 = vshll.u32 %v228, 16
        %v283 = vrot.slane %v281, 5
        %v284 = vor.u32 %v280, %v283
        %v285 = vrot.slane %v284, 4
        %v287 = vshll.u32 %v229, 16
        %v289 = vrot.slane %v287, 5
        %v290 = vsel %vm248, %v285, %v289
        %v292 = vshrl.u32 %v230, 16
        %v294 = vrot.slane %v292, 4
        %v295 = vshll.u32 %v230, 16
        %v297 = vrot.slane %v295, 5
        %v298 = vor.u32 %v294, %v297
        %v299 = vrot.slane %v298, 4
        %v301 = vshll.u32 %v231, 16
        %v303 = vrot.slane %v301, 5
        %v304 = vsel %vm248, %v299, %v303
        %v306 = vshrl.u32 %v232, 16
        %v308 = vrot.slane %v306, 4
        %v309 = vshll.u32 %v232, 16
        %v311 = vrot.slane %v309, 5
        %v312 = vor.u32 %v308, %v311
        %v313 = vrot.slane %v312, 4
        %v315 = vshll.u32 %v233, 16
        %v317 = vrot.slane %v315, 5
        %v318 = vsel %vm248, %v313, %v317
        %v320 = vshrl.u32 %v234, 16
        %v322 = vrot.slane %v320, 4
        %v323 = vshll.u32 %v234, 16
        %v325 = vrot.slane %v323, 5
        %v326 = vor.u32 %v322, %v325
        %v327 = vrot.slane %v326, 4
        %v329 = vshll.u32 %v235, 16
        %v331 = vrot.slane %v329, 5
        %v332 = vsel %vm248, %v327, %v331
        %v334 = vshrl.u32 %v236, 16
        %v336 = vrot.slane %v334, 4
        %v337 = vshll.u32 %v236, 16
        %v339 = vrot.slane %v337, 5
        %v340 = vor.u32 %v336, %v339
        %v341 = vrot.slane %v340, 4
        %v343 = vshll.u32 %v237, 16
        %v345 = vrot.slane %v343, 5
        %v346 = vsel %vm248, %v341, %v345
        %v348 = vshrl.u32 %v238, 16
        %v350 = vrot.slane %v348, 4
        %v351 = vshll.u32 %v238, 16
        %v353 = vrot.slane %v351, 5
        %v354 = vor.u32 %v350, %v353
        %v355 = vrot.slane %v354, 4
        %v357 = vshll.u32 %v239, 16
        %v359 = vrot.slane %v357, 5
        %v360 = vsel %vm248, %v355, %v359
        %s361 = scalar_lea.vmem %s1, 8
        %v362 = vld [vmem:[%s361] sm:$0xf]
        %v363 = vld [vmem:[%s361 + $0x4] sm:$0xf]
        %v364 = vunpack.c.l.b16 %v262
        %v365 = vunpack.c.l.b16 %v276
        %v366 = vunpack.c.l.b16 %v290
        %v367 = vunpack.c.l.b16 %v304
        %v368 = vunpack.c.l.b16 %v318
        %v369 = vunpack.c.l.b16 %v332
        %v370 = vunpack.c.l.b16 %v346
        %v371 = vunpack.c.l.b16 %v360
        %v372 = vpack.c.b16 %v365, %v364
        %v373 = vpack.c.b16 %v367, %v366
        %v374 = vpack.c.b16 %v369, %v368
        %v375 = vpack.c.b16 %v371, %v370
        %v378 = vunpack.c.l.b16 %v362
        %v379 = vunpack.c.l.b16 %v363
        %v380 = vpack.c.b16 %v379, %v378
        %vm382 = vcmask 130048
        %v384 = vsel %vm382, %v372, 0
        %v387 = vsel %vm382, %v373, 0
        %v390 = vsel %vm382, %v374, 0
        %v393 = vsel %vm382, %v375, 0
        %395 = vmatprep.subr.bf16.mxu0 0
        %396 = vmatpush1.bf16.msra.mxu0 %v380
        %397 = vmatprep.subr.bf16.mxu0 0
        %398 = vmatpush1.bf16.msra.mxu0 0
        %399 = vmatprep.subr.bf16.mxu0 0
        %400 = vmatpush1.bf16.msra.mxu0 0
        %401 = vmatprep.subr.bf16.mxu0 0
        %402 = vmatpush1.bf16.msra.mxu0 0
        %403 = vmatprep.subr.bf16.mxu0 0
        %404 = vmatpush1.bf16.msra.mxu0 0
        %405 = vmatprep.subr.bf16.mxu0 0
        %406 = vmatpush1.bf16.msra.mxu0 0
        %407 = vmatprep.subr.bf16.mxu0 0
        %408 = vmatpush1.bf16.msra.mxu0 0
        %409 = vmatprep.subr.bf16.mxu0 0
        %410 = vmatpush1.bf16.msra.mxu0 0
        %411 = vmatprep.subr.bf16.mxu0 0
        %412 = vmatpush1.bf16.msra.mxu0 0
        %413 = vmatprep.subr.bf16.mxu0 0
        %414 = vmatpush1.bf16.msra.mxu0 0
        %415 = vmatprep.subr.bf16.mxu0 0
        %416 = vmatpush1.bf16.msra.mxu0 0
        %417 = vmatprep.subr.bf16.mxu0 0
        %418 = vmatpush1.bf16.msra.mxu0 0
        %419 = vmatprep.subr.bf16.mxu0 0
        %420 = vmatpush1.bf16.msra.mxu0 0
        %421 = vmatprep.subr.bf16.mxu0 0
        %422 = vmatpush1.bf16.msra.mxu0 0
        %423 = vmatprep.subr.bf16.mxu0 0
        %424 = vmatpush1.bf16.msra.mxu0 0
        %425 = vmatprep.subr.bf16.mxu0 0
        %426 = vmatpush1.bf16.msra.mxu0 0
        %427 = vmatprep.mubr.bf16.mxu0 0
        %428 = vmatmul.mubr.bf16.gmra.mrb[0].mxu0 %v384
        %v429 = vpop.f32.mrb[0].mxu0
        %v430 = vadd.f32 0.0, %v429
        %v431 = vpop.f32.mrb[0].mxu0
        %v432 = vpop.f32.mrb[0].mxu0
        %v433 = vadd.f32 0.0, %v432
        %v434 = vpop.f32.mrb[0].mxu0
        %435 = vmatprep.mubr.bf16.mxu0 0
        %436 = vmatmul.mubr.bf16.gmra.mrb[0].mxu0 %v387
        %v437 = vpop.f32.mrb[0].mxu0
        %v438 = vadd.f32 0.0, %v437
        %v439 = vpop.f32.mrb[0].mxu0
        %v440 = vpop.f32.mrb[0].mxu0
        %v441 = vadd.f32 0.0, %v440
        %v442 = vpop.f32.mrb[0].mxu0
        %443 = vmatprep.mubr.bf16.mxu0 0
        %444 = vmatmul.mubr.bf16.gmra.mrb[0].mxu0 %v390
        %v445 = vpop.f32.mrb[0].mxu0
        %v446 = vadd.f32 0.0, %v445
        %v447 = vpop.f32.mrb[0].mxu0
        %v448 = vpop.f32.mrb[0].mxu0
        %v449 = vadd.f32 0.0, %v448
        %v450 = vpop.f32.mrb[0].mxu0
        %451 = vmatprep.mubr.bf16.mxu0 0
        %452 = vmatmul.mubr.bf16.gmra.mrb[0].mxu0 %v393
        %v453 = vpop.f32.mrb[0].mxu0
        %v454 = vadd.f32 0.0, %v453
        %v455 = vpop.f32.mrb[0].mxu0
        %v456 = vpop.f32.mrb[0].mxu0
        %v457 = vadd.f32 0.0, %v456
        %v458 = vpop.f32.mrb[0].mxu0
        %459 = vdwg.mxu0
        %v468 = vunpack.c.l.b16 %v224
        %v469 = vunpack.c.l.b16 %v226
        %v470 = vunpack.c.l.b16 %v228
        %v471 = vunpack.c.l.b16 %v230
        %v472 = vunpack.c.l.b16 %v232
        %v473 = vunpack.c.l.b16 %v234
        %v474 = vunpack.c.l.b16 %v236
        %v475 = vunpack.c.l.b16 %v238
        %v476 = vpack.c.b16 %v469, %v468
        %v477 = vpack.c.b16 %v471, %v470
        %v478 = vpack.c.b16 %v473, %v472
        %v479 = vpack.c.b16 %v475, %v474
        %v482 = vunpack.c.l.b16 %v244
        %v483 = vunpack.c.l.b16 %v245
        %v484 = vpack.c.b16 %v483, %v482
        %v487 = vsel %vm382, %v476, 0
        %v490 = vsel %vm382, %v477, 0
        %v493 = vsel %vm382, %v478, 0
        %v496 = vsel %vm382, %v479, 0
        %498 = vmatprep.subr.bf16.mxu0 0
        %499 = vmatpush1.bf16.msra.mxu0 %v484
        %500 = vmatprep.subr.bf16.mxu0 0
        %501 = vmatpush1.bf16.msra.mxu0 0
        %502 = vmatprep.subr.bf16.mxu0 0
        %503 = vmatpush1.bf16.msra.mxu0 0
        %504 = vmatprep.subr.bf16.mxu0 0
        %505 = vmatpush1.bf16.msra.mxu0 0
        %506 = vmatprep.subr.bf16.mxu0 0
        %507 = vmatpush1.bf16.msra.mxu0 0
        %508 = vmatprep.subr.bf16.mxu0 0
        %509 = vmatpush1.bf16.msra.mxu0 0
        %510 = vmatprep.subr.bf16.mxu0 0
        %511 = vmatpush1.bf16.msra.mxu0 0
        %512 = vmatprep.subr.bf16.mxu0 0
        %513 = vmatpush1.bf16.msra.mxu0 0
        %514 = vmatprep.subr.bf16.mxu0 0
        %515 = vmatpush1.bf16.msra.mxu0 0
        %516 = vmatprep.subr.bf16.mxu0 0
        %517 = vmatpush1.bf16.msra.mxu0 0
        %518 = vmatprep.subr.bf16.mxu0 0
        %519 = vmatpush1.bf16.msra.mxu0 0
        %520 = vmatprep.subr.bf16.mxu0 0
        %521 = vmatpush1.bf16.msra.mxu0 0
        %522 = vmatprep.subr.bf16.mxu0 0
        %523 = vmatpush1.bf16.msra.mxu0 0
        %524 = vmatprep.subr.bf16.mxu0 0
        %525 = vmatpush1.bf16.msra.mxu0 0
        %526 = vmatprep.subr.bf16.mxu0 0
        %527 = vmatpush1.bf16.msra.mxu0 0
        %528 = vmatprep.subr.bf16.mxu0 0
        %529 = vmatpush1.bf16.msra.mxu0 0
        %530 = vmatprep.mubr.bf16.mxu0 0
        %531 = vmatmul.mubr.bf16.gmra.mrb[0].mxu0 %v487
        %v532 = vpop.f32.mrb[0].mxu0
        %v533 = vadd.f32 %v430, %v532
        %v534 = vpop.f32.mrb[0].mxu0
        %v535 = vpop.f32.mrb[0].mxu0
        %v536 = vadd.f32 %v433, %v535
        %v537 = vpop.f32.mrb[0].mxu0
        %538 = vmatprep.mubr.bf16.mxu0 0
        %539 = vmatmul.mubr.bf16.gmra.mrb[0].mxu0 %v490
        %v540 = vpop.f32.mrb[0].mxu0
        %v541 = vadd.f32 %v438, %v540
        %v542 = vpop.f32.mrb[0].mxu0
        %v543 = vpop.f32.mrb[0].mxu0
        %v544 = vadd.f32 %v441, %v543
        %v545 = vpop.f32.mrb[0].mxu0
        %546 = vmatprep.mubr.bf16.mxu0 0
        %547 = vmatmul.mubr.bf16.gmra.mrb[0].mxu0 %v493
        %v548 = vpop.f32.mrb[0].mxu0
        %v549 = vadd.f32 %v446, %v548
        %v550 = vpop.f32.mrb[0].mxu0
        %v551 = vpop.f32.mrb[0].mxu0
        %v552 = vadd.f32 %v449, %v551
        %v553 = vpop.f32.mrb[0].mxu0
        %554 = vmatprep.mubr.bf16.mxu0 0
        %555 = vmatmul.mubr.bf16.gmra.mrb[0].mxu0 %v496
        %v556 = vpop.f32.mrb[0].mxu0
        %v557 = vadd.f32 %v454, %v556
        %v558 = vpop.f32.mrb[0].mxu0
        %v559 = vpop.f32.mrb[0].mxu0
        %v560 = vadd.f32 %v457, %v559
        %v561 = vpop.f32.mrb[0].mxu0
        %562 = vdwg.mxu0
        %vm571 = vcmask 1042432
        %vm572 = vcmask 1046532
        %vm573 = vmor %vm571, %vm572
        %v574 = vrot.slane %v224, 5
        %v575 = vrot.slane %v574, 4
        %v576 = vrot.slane %v225, 5
        %v577 = vsel %vm573, %v575, %v576
        %v578 = vrot.slane %v226, 5
        %v579 = vrot.slane %v578, 4
        %v580 = vrot.slane %v227, 5
        %v581 = vsel %vm573, %v579, %v580
        %v582 = vrot.slane %v228, 5
        %v583 = vrot.slane %v582, 4
        %v584 = vrot.slane %v229, 5
        %v585 = vsel %vm573, %v583, %v584
        %v586 = vrot.slane %v230, 5
        %v587 = vrot.slane %v586, 4
        %v588 = vrot.slane %v231, 5
        %v589 = vsel %vm573, %v587, %v588
        %v590 = vrot.slane %v232, 5
        %v591 = vrot.slane %v590, 4
        %v592 = vrot.slane %v233, 5
        %v593 = vsel %vm573, %v591, %v592
        %v594 = vrot.slane %v234, 5
        %v595 = vrot.slane %v594, 4
        %v596 = vrot.slane %v235, 5
        %v597 = vsel %vm573, %v595, %v596
        %v598 = vrot.slane %v236, 5
        %v599 = vrot.slane %v598, 4
        %v600 = vrot.slane %v237, 5
        %v601 = vsel %vm573, %v599, %v600
        %v602 = vrot.slane %v238, 5
        %v603 = vrot.slane %v602, 4
        %v604 = vrot.slane %v239, 5
        %v605 = vsel %vm573, %v603, %v604
        %s606 = scalar_lea.vmem %s1, 16
        %v607 = vld [vmem:[%s606] sm:$0xf]
        %v608 = vld [vmem:[%s606 + $0x4] sm:$0xf]
        %v609 = vunpack.c.l.b16 %v577
        %v610 = vunpack.c.l.b16 %v581
        %v611 = vunpack.c.l.b16 %v585
        %v612 = vunpack.c.l.b16 %v589
        %v613 = vunpack.c.l.b16 %v593
        %v614 = vunpack.c.l.b16 %v597
        %v615 = vunpack.c.l.b16 %v601
        %v616 = vunpack.c.l.b16 %v605
        %v617 = vpack.c.b16 %v610, %v609
        %v618 = vpack.c.b16 %v612, %v611
        %v619 = vpack.c.b16 %v614, %v613
        %v620 = vpack.c.b16 %v616, %v615
        %v623 = vunpack.c.l.b16 %v607
        %v624 = vunpack.c.l.b16 %v608
        %v625 = vpack.c.b16 %v624, %v623
        %v628 = vsel %vm382, %v617, 0
        %v631 = vsel %vm382, %v618, 0
        %v634 = vsel %vm382, %v619, 0
        %v637 = vsel %vm382, %v620, 0
        %639 = vmatprep.subr.bf16.mxu0 0
        %640 = vmatpush1.bf16.msra.mxu0 %v625
        %641 = vmatprep.subr.bf16.mxu0 0
        %642 = vmatpush1.bf16.msra.mxu0 0
        %643 = vmatprep.subr.bf16.mxu0 0
        %644 = vmatpush1.bf16.msra.mxu0 0
        %645 = vmatprep.subr.bf16.mxu0 0
        %646 = vmatpush1.bf16.msra.mxu0 0
        %647 = vmatprep.subr.bf16.mxu0 0
        %648 = vmatpush1.bf16.msra.mxu0 0
        %649 = vmatprep.subr.bf16.mxu0 0
        %650 = vmatpush1.bf16.msra.mxu0 0
        %651 = vmatprep.subr.bf16.mxu0 0
        %652 = vmatpush1.bf16.msra.mxu0 0
        %653 = vmatprep.subr.bf16.mxu0 0
        %654 = vmatpush1.bf16.msra.mxu0 0
        %655 = vmatprep.subr.bf16.mxu0 0
        %656 = vmatpush1.bf16.msra.mxu0 0
        %657 = vmatprep.subr.bf16.mxu0 0
        %658 = vmatpush1.bf16.msra.mxu0 0
        %659 = vmatprep.subr.bf16.mxu0 0
        %660 = vmatpush1.bf16.msra.mxu0 0
        %661 = vmatprep.subr.bf16.mxu0 0
        %662 = vmatpush1.bf16.msra.mxu0 0
        %663 = vmatprep.subr.bf16.mxu0 0
        %664 = vmatpush1.bf16.msra.mxu0 0
        %665 = vmatprep.subr.bf16.mxu0 0
        %666 = vmatpush1.bf16.msra.mxu0 0
        %667 = vmatprep.subr.bf16.mxu0 0
        %668 = vmatpush1.bf16.msra.mxu0 0
        %669 = vmatprep.subr.bf16.mxu0 0
        %670 = vmatpush1.bf16.msra.mxu0 0
        %671 = vmatprep.mubr.bf16.mxu0 0
        %672 = vmatmul.mubr.bf16.gmra.mrb[0].mxu0 %v628
        %v673 = vpop.f32.mrb[0].mxu0
        %v674 = vadd.f32 0.0, %v673
        %v675 = vpop.f32.mrb[0].mxu0
        %v676 = vpop.f32.mrb[0].mxu0
        %v677 = vadd.f32 0.0, %v676
        %v678 = vpop.f32.mrb[0].mxu0
        %679 = vmatprep.mubr.bf16.mxu0 0
        %680 = vmatmul.mubr.bf16.gmra.mrb[0].mxu0 %v631
        %v681 = vpop.f32.mrb[0].mxu0
        %v682 = vadd.f32 0.0, %v681
        %v683 = vpop.f32.mrb[0].mxu0
        %v684 = vpop.f32.mrb[0].mxu0
        %v685 = vadd.f32 0.0, %v684
        %v686 = vpop.f32.mrb[0].mxu0
        %687 = vmatprep.mubr.bf16.mxu0 0
        %688 = vmatmul.mubr.bf16.gmra.mrb[0].mxu0 %v634
        %v689 = vpop.f32.mrb[0].mxu0
        %v690 = vadd.f32 0.0, %v689
        %v691 = vpop.f32.mrb[0].mxu0
        %v692 = vpop.f32.mrb[0].mxu0
        %v693 = vadd.f32 0.0, %v692
        %v694 = vpop.f32.mrb[0].mxu0
        %695 = vmatprep.mubr.bf16.mxu0 0
        %696 = vmatmul.mubr.bf16.gmra.mrb[0].mxu0 %v637
        %v697 = vpop.f32.mrb[0].mxu0
        %v698 = vadd.f32 0.0, %v697
        %v699 = vpop.f32.mrb[0].mxu0
        %v700 = vpop.f32.mrb[0].mxu0
        %v701 = vadd.f32 0.0, %v700
        %v702 = vpop.f32.mrb[0].mxu0
        %703 = vdwg.mxu0
        %v704 = vadd.f32 %v533, %v674
        %v705 = vadd.f32 %v536, %v677
        %v706 = vadd.f32 %v541, %v682
        %v707 = vadd.f32 %v544, %v685
        %v708 = vadd.f32 %v549, %v690
        %v709 = vadd.f32 %v552, %v693
        %v710 = vadd.f32 %v557, %v698
        %v711 = vadd.f32 %v560, %v701
        %s712 = scalar_lea.vmem %s1, 24
        %v713 = vld [vmem:[%s712] sm:$0xf]
        %v714 = vld [vmem:[%s712 + $0x4] sm:$0xf]
        %v716 = vunpack.c.l.b16 %v240
        %v717 = vpack.c.b16 %v470, %v469
        %v718 = vpack.c.b16 %v472, %v471
        %v719 = vpack.c.b16 %v474, %v473
        %v720 = vpack.c.b16 %v716, %v475
        %v723 = vunpack.c.l.b16 %v713
        %v724 = vunpack.c.l.b16 %v714
        %v725 = vpack.c.b16 %v724, %v723
        %v728 = vsel %vm382, %v717, 0
        %v731 = vsel %vm382, %v718, 0
        %v734 = vsel %vm382, %v719, 0
        %v737 = vsel %vm382, %v720, 0
        %739 = vmatprep.subr.bf16.mxu0 0
        %740 = vmatpush1.bf16.msra.mxu0 %v725
        %741 = vmatprep.subr.bf16.mxu0 0
        %742 = vmatpush1.bf16.msra.mxu0 0
        %743 = vmatprep.subr.bf16.mxu0 0
        %744 = vmatpush1.bf16.msra.mxu0 0
        %745 = vmatprep.subr.bf16.mxu0 0
        %746 = vmatpush1.bf16.msra.mxu0 0
        %747 = vmatprep.subr.bf16.mxu0 0
        %748 = vmatpush1.bf16.msra.mxu0 0
        %749 = vmatprep.subr.bf16.mxu0 0
        %750 = vmatpush1.bf16.msra.mxu0 0
        %751 = vmatprep.subr.bf16.mxu0 0
        %752 = vmatpush1.bf16.msra.mxu0 0
        %753 = vmatprep.subr.bf16.mxu0 0
        %754 = vmatpush1.bf16.msra.mxu0 0
        %755 = vmatprep.subr.bf16.mxu0 0
        %756 = vmatpush1.bf16.msra.mxu0 0
        %757 = vmatprep.subr.bf16.mxu0 0
        %758 = vmatpush1.bf16.msra.mxu0 0
        %759 = vmatprep.subr.bf16.mxu0 0
        %760 = vmatpush1.bf16.msra.mxu0 0
        %761 = vmatprep.subr.bf16.mxu0 0
        %762 = vmatpush1.bf16.msra.mxu0 0
        %763 = vmatprep.subr.bf16.mxu0 0
        %764 = vmatpush1.bf16.msra.mxu0 0
        %765 = vmatprep.subr.bf16.mxu0 0
        %766 = vmatpush1.bf16.msra.mxu0 0
        %767 = vmatprep.subr.bf16.mxu0 0
        %768 = vmatpush1.bf16.msra.mxu0 0
        %769 = vmatprep.subr.bf16.mxu0 0
        %770 = vmatpush1.bf16.msra.mxu0 0
        %771 = vmatprep.mubr.bf16.mxu0 0
        %772 = vmatmul.mubr.bf16.gmra.mrb[0].mxu0 %v728
        %v773 = vpop.f32.mrb[0].mxu0
        %v774 = vadd.f32 0.0, %v773
        %v775 = vpop.f32.mrb[0].mxu0
        %v776 = vpop.f32.mrb[0].mxu0
        %v777 = vadd.f32 0.0, %v776
        %v778 = vpop.f32.mrb[0].mxu0
        %779 = vmatprep.mubr.bf16.mxu0 0
        %780 = vmatmul.mubr.bf16.gmra.mrb[0].mxu0 %v731
        %v781 = vpop.f32.mrb[0].mxu0
        %v782 = vadd.f32 0.0, %v781
        %v783 = vpop.f32.mrb[0].mxu0
        %v784 = vpop.f32.mrb[0].mxu0
        %v785 = vadd.f32 0.0, %v784
        %v786 = vpop.f32.mrb[0].mxu0
        %787 = vmatprep.mubr.bf16.mxu0 0
        %788 = vmatmul.mubr.bf16.gmra.mrb[0].mxu0 %v734
        %v789 = vpop.f32.mrb[0].mxu0
        %v790 = vadd.f32 0.0, %v789
        %v791 = vpop.f32.mrb[0].mxu0
        %v792 = vpop.f32.mrb[0].mxu0
        %v793 = vadd.f32 0.0, %v792
        %v794 = vpop.f32.mrb[0].mxu0
        %795 = vmatprep.mubr.bf16.mxu0 0
        %796 = vmatmul.mubr.bf16.gmra.mrb[0].mxu0 %v737
        %v797 = vpop.f32.mrb[0].mxu0
        %v798 = vadd.f32 0.0, %v797
        %v799 = vpop.f32.mrb[0].mxu0
        %v800 = vpop.f32.mrb[0].mxu0
        %v801 = vadd.f32 0.0, %v800
        %v802 = vpop.f32.mrb[0].mxu0
        %803 = vdwg.mxu0
        %v804 = vadd.f32 %v704, %v774
        %v805 = vadd.f32 %v705, %v777
        %v806 = vadd.f32 %v706, %v782
        %v807 = vadd.f32 %v707, %v785
        %v808 = vadd.f32 %v708, %v790
        %v809 = vadd.f32 %v709, %v793
        %v810 = vadd.f32 %v710, %v798
        %v811 = vadd.f32 %v711, %v801
        %v813 = vshrl.u32 %v240, 16
        %v815 = vrot.slane %v813, 4
        %v816 = vshll.u32 %v240, 16
        %v818 = vrot.slane %v816, 5
        %v819 = vor.u32 %v815, %v818
        %v820 = vrot.slane %v819, 4
        %v822 = vshll.u32 %v241, 16
        %v824 = vrot.slane %v822, 5
        %v825 = vsel %vm248, %v820, %v824
        %s826 = scalar_lea.vmem %s1, 32
        %v827 = vld [vmem:[%s826] sm:$0xf]
        %v828 = vld [vmem:[%s826 + $0x4] sm:$0xf]
        %v829 = vunpack.c.l.b16 %v825
        %v830 = vpack.c.b16 %v366, %v365
        %v831 = vpack.c.b16 %v368, %v367
        %v832 = vpack.c.b16 %v370, %v369
        %v833 = vpack.c.b16 %v829, %v371
        %v836 = vunpack.c.l.b16 %v827
        %v837 = vunpack.c.l.b16 %v828
        %v838 = vpack.c.b16 %v837, %v836
        %v841 = vsel %vm382, %v830, 0
        %v844 = vsel %vm382, %v831, 0
        %v847 = vsel %vm382, %v832, 0
        %v850 = vsel %vm382, %v833, 0
        %852 = vmatprep.subr.bf16.mxu0 0
        %853 = vmatpush1.bf16.msra.mxu0 %v838
        %854 = vmatprep.subr.bf16.mxu0 0
        %855 = vmatpush1.bf16.msra.mxu0 0
        %856 = vmatprep.subr.bf16.mxu0 0
        %857 = vmatpush1.bf16.msra.mxu0 0
        %858 = vmatprep.subr.bf16.mxu0 0
        %859 = vmatpush1.bf16.msra.mxu0 0
        %860 = vmatprep.subr.bf16.mxu0 0
        %861 = vmatpush1.bf16.msra.mxu0 0
        %862 = vmatprep.subr.bf16.mxu0 0
        %863 = vmatpush1.bf16.msra.mxu0 0
        %864 = vmatprep.subr.bf16.mxu0 0
        %865 = vmatpush1.bf16.msra.mxu0 0
        %866 = vmatprep.subr.bf16.mxu0 0
        %867 = vmatpush1.bf16.msra.mxu0 0
        %868 = vmatprep.subr.bf16.mxu0 0
        %869 = vmatpush1.bf16.msra.mxu0 0
        %870 = vmatprep.subr.bf16.mxu0 0
        %871 = vmatpush1.bf16.msra.mxu0 0
        %872 = vmatprep.subr.bf16.mxu0 0
        %873 = vmatpush1.bf16.msra.mxu0 0
        %874 = vmatprep.subr.bf16.mxu0 0
        %875 = vmatpush1.bf16.msra.mxu0 0
        %876 = vmatprep.subr.bf16.mxu0 0
        %877 = vmatpush1.bf16.msra.mxu0 0
        %878 = vmatprep.subr.bf16.mxu0 0
        %879 = vmatpush1.bf16.msra.mxu0 0
        %880 = vmatprep.subr.bf16.mxu0 0
        %881 = vmatpush1.bf16.msra.mxu0 0
        %882 = vmatprep.subr.bf16.mxu0 0
        %883 = vmatpush1.bf16.msra.mxu0 0
        %884 = vmatprep.mubr.bf16.mxu0 0
        %885 = vmatmul.mubr.bf16.gmra.mrb[0].mxu0 %v841
        %v886 = vpop.f32.mrb[0].mxu0
        %v887 = vadd.f32 0.0, %v886
        %v888 = vpop.f32.mrb[0].mxu0
        %v889 = vpop.f32.mrb[0].mxu0
        %v890 = vadd.f32 0.0, %v889
        %v891 = vpop.f32.mrb[0].mxu0
        %892 = vmatprep.mubr.bf16.mxu0 0
        %893 = vmatmul.mubr.bf16.gmra.mrb[0].mxu0 %v844
        %v894 = vpop.f32.mrb[0].mxu0
        %v895 = vadd.f32 0.0, %v894
        %v896 = vpop.f32.mrb[0].mxu0
        %v897 = vpop.f32.mrb[0].mxu0
        %v898 = vadd.f32 0.0, %v897
        %v899 = vpop.f32.mrb[0].mxu0
        %900 = vmatprep.mubr.bf16.mxu0 0
        %901 = vmatmul.mubr.bf16.gmra.mrb[0].mxu0 %v847
        %v902 = vpop.f32.mrb[0].mxu0
        %v903 = vadd.f32 0.0, %v902
        %v904 = vpop.f32.mrb[0].mxu0
        %v905 = vpop.f32.mrb[0].mxu0
        %v906 = vadd.f32 0.0, %v905
        %v907 = vpop.f32.mrb[0].mxu0
        %908 = vmatprep.mubr.bf16.mxu0 0
        %909 = vmatmul.mubr.bf16.gmra.mrb[0].mxu0 %v850
        %v910 = vpop.f32.mrb[0].mxu0
        %v911 = vadd.f32 0.0, %v910
        %v912 = vpop.f32.mrb[0].mxu0
        %v913 = vpop.f32.mrb[0].mxu0
        %v914 = vadd.f32 0.0, %v913
        %v915 = vpop.f32.mrb[0].mxu0
        %916 = vdwg.mxu0
        %v917 = vadd.f32 %v804, %v887
        %v918 = vadd.f32 %v805, %v890
        %v919 = vadd.f32 %v806, %v895
        %v920 = vadd.f32 %v807, %v898
        %v921 = vadd.f32 %v808, %v903
        %v922 = vadd.f32 %v809, %v906
        %v923 = vadd.f32 %v810, %v911
        %v924 = vadd.f32 %v811, %v914
        %v926 = vrot.slane %v240, 5
        %v927 = vrot.slane %v926, 4
        %v928 = vrot.slane %v241, 5
        %v929 = vsel %vm573, %v927, %v928
        %s930 = scalar_lea.vmem %s1, 40
        %v931 = vld [vmem:[%s930] sm:$0xf]
        %v932 = vld [vmem:[%s930 + $0x4] sm:$0xf]
        %v933 = vunpack.c.l.b16 %v929
        %v934 = vpack.c.b16 %v611, %v610
        %v935 = vpack.c.b16 %v613, %v612
        %v936 = vpack.c.b16 %v615, %v614
        %v937 = vpack.c.b16 %v933, %v616
        %v940 = vunpack.c.l.b16 %v931
        %v941 = vunpack.c.l.b16 %v932
        %v942 = vpack.c.b16 %v941, %v940
        %v945 = vsel %vm382, %v934, 0
        %v948 = vsel %vm382, %v935, 0
        %v951 = vsel %vm382, %v936, 0
        %v954 = vsel %vm382, %v937, 0
        %956 = vmatprep.subr.bf16.mxu0 0
        %957 = vmatpush1.bf16.msra.mxu0 %v942
        %958 = vmatprep.subr.bf16.mxu0 0
        %959 = vmatpush1.bf16.msra.mxu0 0
        %960 = vmatprep.subr.bf16.mxu0 0
        %961 = vmatpush1.bf16.msra.mxu0 0
        %962 = vmatprep.subr.bf16.mxu0 0
        %963 = vmatpush1.bf16.msra.mxu0 0
        %964 = vmatprep.subr.bf16.mxu0 0
        %965 = vmatpush1.bf16.msra.mxu0 0
        %966 = vmatprep.subr.bf16.mxu0 0
        %967 = vmatpush1.bf16.msra.mxu0 0
        %968 = vmatprep.subr.bf16.mxu0 0
        %969 = vmatpush1.bf16.msra.mxu0 0
        %970 = vmatprep.subr.bf16.mxu0 0
        %971 = vmatpush1.bf16.msra.mxu0 0
        %972 = vmatprep.subr.bf16.mxu0 0
        %973 = vmatpush1.bf16.msra.mxu0 0
        %974 = vmatprep.subr.bf16.mxu0 0
        %975 = vmatpush1.bf16.msra.mxu0 0
        %976 = vmatprep.subr.bf16.mxu0 0
        %977 = vmatpush1.bf16.msra.mxu0 0
        %978 = vmatprep.subr.bf16.mxu0 0
        %979 = vmatpush1.bf16.msra.mxu0 0
        %980 = vmatprep.subr.bf16.mxu0 0
        %981 = vmatpush1.bf16.msra.mxu0 0
        %982 = vmatprep.subr.bf16.mxu0 0
        %983 = vmatpush1.bf16.msra.mxu0 0
        %984 = vmatprep.subr.bf16.mxu0 0
        %985 = vmatpush1.bf16.msra.mxu0 0
        %986 = vmatprep.subr.bf16.mxu0 0
        %987 = vmatpush1.bf16.msra.mxu0 0
        %988 = vmatprep.mubr.bf16.mxu0 0
        %989 = vmatmul.mubr.bf16.gmra.mrb[0].mxu0 %v945
        %v990 = vpop.f32.mrb[0].mxu0
        %v991 = vadd.f32 0.0, %v990
        %v992 = vpop.f32.mrb[0].mxu0
        %v993 = vpop.f32.mrb[0].mxu0
        %v994 = vadd.f32 0.0, %v993
        %v995 = vpop.f32.mrb[0].mxu0
        %996 = vmatprep.mubr.bf16.mxu0 0
        %997 = vmatmul.mubr.bf16.gmra.mrb[0].mxu0 %v948
        %v998 = vpop.f32.mrb[0].mxu0
        %v999 = vadd.f32 0.0, %v998
        %v1000 = vpop.f32.mrb[0].mxu0
        %v1001 = vpop.f32.mrb[0].mxu0
        %v1002 = vadd.f32 0.0, %v1001
        %v1003 = vpop.f32.mrb[0].mxu0
        %1004 = vmatprep.mubr.bf16.mxu0 0
        %1005 = vmatmul.mubr.bf16.gmra.mrb[0].mxu0 %v951
        %v1006 = vpop.f32.mrb[0].mxu0
        %v1007 = vadd.f32 0.0, %v1006
        %v1008 = vpop.f32.mrb[0].mxu0
        %v1009 = vpop.f32.mrb[0].mxu0
        %v1010 = vadd.f32 0.0, %v1009
        %v1011 = vpop.f32.mrb[0].mxu0
        %1012 = vmatprep.mubr.bf16.mxu0 0
        %1013 = vmatmul.mubr.bf16.gmra.mrb[0].mxu0 %v954
        %v1014 = vpop.f32.mrb[0].mxu0
        %v1015 = vadd.f32 0.0, %v1014
        %v1016 = vpop.f32.mrb[0].mxu0
        %v1017 = vpop.f32.mrb[0].mxu0
        %v1018 = vadd.f32 0.0, %v1017
        %v1019 = vpop.f32.mrb[0].mxu0
        %1020 = vdwg.mxu0
        %v1021 = vadd.f32 %v917, %v991
        %v1022 = vadd.f32 %v918, %v994
        %v1023 = vadd.f32 %v919, %v999
        %v1024 = vadd.f32 %v920, %v1002
        %v1025 = vadd.f32 %v921, %v1007
        %v1026 = vadd.f32 %v922, %v1010
        %v1027 = vadd.f32 %v923, %v1015
        %v1028 = vadd.f32 %v924, %v1018
        %s1029 = scalar_lea.vmem %s1, 48
        %v1030 = vld [vmem:[%s1029] sm:$0xf]
        %v1031 = vld [vmem:[%s1029 + $0x4] sm:$0xf]
        %v1033 = vunpack.c.l.b16 %v242
        %v1034 = vpack.c.b16 %v1033, %v716
        %v1037 = vunpack.c.l.b16 %v1030
        %v1038 = vunpack.c.l.b16 %v1031
        %v1039 = vpack.c.b16 %v1038, %v1037
        %v1042 = vsel %vm382, %v1034, 0
        %1044 = vmatprep.subr.bf16.mxu0 0
        %1045 = vmatpush1.bf16.msra.mxu0 %v1039
        %1046 = vmatprep.subr.bf16.mxu0 0
        %1047 = vmatpush1.bf16.msra.mxu0 0
        %1048 = vmatprep.subr.bf16.mxu0 0
        %1049 = vmatpush1.bf16.msra.mxu0 0
        %1050 = vmatprep.subr.bf16.mxu0 0
        %1051 = vmatpush1.bf16.msra.mxu0 0
        %1052 = vmatprep.subr.bf16.mxu0 0
        %1053 = vmatpush1.bf16.msra.mxu0 0
        %1054 = vmatprep.subr.bf16.mxu0 0
        %1055 = vmatpush1.bf16.msra.mxu0 0
        %1056 = vmatprep.subr.bf16.mxu0 0
        %1057 = vmatpush1.bf16.msra.mxu0 0
        %1058 = vmatprep.subr.bf16.mxu0 0
        %1059 = vmatpush1.bf16.msra.mxu0 0
        %1060 = vmatprep.subr.bf16.mxu0 0
        %1061 = vmatpush1.bf16.msra.mxu0 0
        %1062 = vmatprep.subr.bf16.mxu0 0
        %1063 = vmatpush1.bf16.msra.mxu0 0
        %1064 = vmatprep.subr.bf16.mxu0 0
        %1065 = vmatpush1.bf16.msra.mxu0 0
        %1066 = vmatprep.subr.bf16.mxu0 0
        %1067 = vmatpush1.bf16.msra.mxu0 0
        %1068 = vmatprep.subr.bf16.mxu0 0
        %1069 = vmatpush1.bf16.msra.mxu0 0
        %1070 = vmatprep.subr.bf16.mxu0 0
        %1071 = vmatpush1.bf16.msra.mxu0 0
        %1072 = vmatprep.subr.bf16.mxu0 0
        %1073 = vmatpush1.bf16.msra.mxu0 0
        %1074 = vmatprep.subr.bf16.mxu0 0
        %1075 = vmatpush1.bf16.msra.mxu0 0
        %1076 = vmatprep.mubr.bf16.mxu0 0
        %1077 = vmatmul.mubr.bf16.gmra.mrb[0].mxu0 %v490
        %v1078 = vpop.f32.mrb[0].mxu0
        %v1079 = vadd.f32 0.0, %v1078
        %v1080 = vpop.f32.mrb[0].mxu0
        %v1081 = vpop.f32.mrb[0].mxu0
        %v1082 = vadd.f32 0.0, %v1081
        %v1083 = vpop.f32.mrb[0].mxu0
        %1084 = vmatprep.mubr.bf16.mxu0 0
        %1085 = vmatmul.mubr.bf16.gmra.mrb[0].mxu0 %v493
        %v1086 = vpop.f32.mrb[0].mxu0
        %v1087 = vadd.f32 0.0, %v1086
        %v1088 = vpop.f32.mrb[0].mxu0
        %v1089 = vpop.f32.mrb[0].mxu0
        %v1090 = vadd.f32 0.0, %v1089
        %v1091 = vpop.f32.mrb[0].mxu0
        %1092 = vmatprep.mubr.bf16.mxu0 0
        %1093 = vmatmul.mubr.bf16.gmra.mrb[0].mxu0 %v496
        %v1094 = vpop.f32.mrb[0].mxu0
        %v1095 = vadd.f32 0.0, %v1094
        %v1096 = vpop.f32.mrb[0].mxu0
        %v1097 = vpop.f32.mrb[0].mxu0
        %v1098 = vadd.f32 0.0, %v1097
        %v1099 = vpop.f32.mrb[0].mxu0
        %1100 = vmatprep.mubr.bf16.mxu0 0
        %1101 = vmatmul.mubr.bf16.gmra.mrb[0].mxu0 %v1042
        %v1102 = vpop.f32.mrb[0].mxu0
        %v1103 = vadd.f32 0.0, %v1102
        %v1104 = vpop.f32.mrb[0].mxu0
        %v1105 = vpop.f32.mrb[0].mxu0
        %v1106 = vadd.f32 0.0, %v1105
        %v1107 = vpop.f32.mrb[0].mxu0
        %1108 = vdwg.mxu0
        %v1109 = vadd.f32 %v1021, %v1079
        %v1110 = vadd.f32 %v1022, %v1082
        %v1111 = vadd.f32 %v1023, %v1087
        %v1112 = vadd.f32 %v1024, %v1090
        %v1113 = vadd.f32 %v1025, %v1095
        %v1114 = vadd.f32 %v1026, %v1098
        %v1115 = vadd.f32 %v1027, %v1103
        %v1116 = vadd.f32 %v1028, %v1106
        %v1118 = vshrl.u32 %v242, 16
        %v1120 = vrot.slane %v1118, 4
        %v1121 = vshll.u32 %v242, 16
        %v1123 = vrot.slane %v1121, 5
        %v1124 = vor.u32 %v1120, %v1123
        %v1125 = vrot.slane %v1124, 4
        %v1127 = vshll.u32 %v243, 16
        %v1129 = vrot.slane %v1127, 5
        %v1130 = vsel %vm248, %v1125, %v1129
        %s1131 = scalar_lea.vmem %s1, 56
        %v1132 = vld [vmem:[%s1131] sm:$0xf]
        %v1133 = vld [vmem:[%s1131 + $0x4] sm:$0xf]
        %v1134 = vunpack.c.l.b16 %v1130
        %v1135 = vpack.c.b16 %v1134, %v829
        %v1138 = vunpack.c.l.b16 %v1132
        %v1139 = vunpack.c.l.b16 %v1133
        %v1140 = vpack.c.b16 %v1139, %v1138
        %v1143 = vsel %vm382, %v1135, 0
        %1145 = vmatprep.subr.bf16.mxu0 0
        %1146 = vmatpush1.bf16.msra.mxu0 %v1140
        %1147 = vmatprep.subr.bf16.mxu0 0
        %1148 = vmatpush1.bf16.msra.mxu0 0
        %1149 = vmatprep.subr.bf16.mxu0 0
        %1150 = vmatpush1.bf16.msra.mxu0 0
        %1151 = vmatprep.subr.bf16.mxu0 0
        %1152 = vmatpush1.bf16.msra.mxu0 0
        %1153 = vmatprep.subr.bf16.mxu0 0
        %1154 = vmatpush1.bf16.msra.mxu0 0
        %1155 = vmatprep.subr.bf16.mxu0 0
        %1156 = vmatpush1.bf16.msra.mxu0 0
        %1157 = vmatprep.subr.bf16.mxu0 0
        %1158 = vmatpush1.bf16.msra.mxu0 0
        %1159 = vmatprep.subr.bf16.mxu0 0
        %1160 = vmatpush1.bf16.msra.mxu0 0
        %1161 = vmatprep.subr.bf16.mxu0 0
        %1162 = vmatpush1.bf16.msra.mxu0 0
        %1163 = vmatprep.subr.bf16.mxu0 0
        %1164 = vmatpush1.bf16.msra.mxu0 0
        %1165 = vmatprep.subr.bf16.mxu0 0
        %1166 = vmatpush1.bf16.msra.mxu0 0
        %1167 = vmatprep.subr.bf16.mxu0 0
        %1168 = vmatpush1.bf16.msra.mxu0 0
        %1169 = vmatprep.subr.bf16.mxu0 0
        %1170 = vmatpush1.bf16.msra.mxu0 0
        %1171 = vmatprep.subr.bf16.mxu0 0
        %1172 = vmatpush1.bf16.msra.mxu0 0
        %1173 = vmatprep.subr.bf16.mxu0 0
        %1174 = vmatpush1.bf16.msra.mxu0 0
        %1175 = vmatprep.subr.bf16.mxu0 0
        %1176 = vmatpush1.bf16.msra.mxu0 0
        %1177 = vmatprep.mubr.bf16.mxu0 0
        %1178 = vmatmul.mubr.bf16.gmra.mrb[0].mxu0 %v387
        %v1179 = vpop.f32.mrb[0].mxu0
        %v1180 = vadd.f32 0.0, %v1179
        %v1181 = vpop.f32.mrb[0].mxu0
        %v1182 = vpop.f32.mrb[0].mxu0
        %v1183 = vadd.f32 0.0, %v1182
        %v1184 = vpop.f32.mrb[0].mxu0
        %1185 = vmatprep.mubr.bf16.mxu0 0
        %1186 = vmatmul.mubr.bf16.gmra.mrb[0].mxu0 %v390
        %v1187 = vpop.f32.mrb[0].mxu0
        %v1188 = vadd.f32 0.0, %v1187
        %v1189 = vpop.f32.mrb[0].mxu0
        %v1190 = vpop.f32.mrb[0].mxu0
        %v1191 = vadd.f32 0.0, %v1190
        %v1192 = vpop.f32.mrb[0].mxu0
        %1193 = vmatprep.mubr.bf16.mxu0 0
        %1194 = vmatmul.mubr.bf16.gmra.mrb[0].mxu0 %v393
        %v1195 = vpop.f32.mrb[0].mxu0
        %v1196 = vadd.f32 0.0, %v1195
        %v1197 = vpop.f32.mrb[0].mxu0
        %v1198 = vpop.f32.mrb[0].mxu0
        %v1199 = vadd.f32 0.0, %v1198
        %v1200 = vpop.f32.mrb[0].mxu0
        %1201 = vmatprep.mubr.bf16.mxu0 0
        %1202 = vmatmul.mubr.bf16.gmra.mrb[0].mxu0 %v1143
        %v1203 = vpop.f32.mrb[0].mxu0
        %v1204 = vadd.f32 0.0, %v1203
        %v1205 = vpop.f32.mrb[0].mxu0
        %v1206 = vpop.f32.mrb[0].mxu0
        %v1207 = vadd.f32 0.0, %v1206
        %v1208 = vpop.f32.mrb[0].mxu0
        %1209 = vdwg.mxu0
        %v1210 = vadd.f32 %v1109, %v1180
        %v1211 = vadd.f32 %v1110, %v1183
        %v1212 = vadd.f32 %v1111, %v1188
        %v1213 = vadd.f32 %v1112, %v1191
        %v1214 = vadd.f32 %v1113, %v1196
        %v1215 = vadd.f32 %v1114, %v1199
        %v1216 = vadd.f32 %v1115, %v1204
        %v1217 = vadd.f32 %v1116, %v1207
        %v1219 = vrot.slane %v242, 5
        %v1220 = vrot.slane %v1219, 4
        %v1221 = vrot.slane %v243, 5
        %v1222 = vsel %vm573, %v1220, %v1221
        %s1223 = scalar_lea.vmem %s1, 64
        %v1224 = vld [vmem:[%s1223] sm:$0xf]
        %v1225 = vld [vmem:[%s1223 + $0x4] sm:$0xf]
        %v1226 = vunpack.c.l.b16 %v1222
        %v1227 = vpack.c.b16 %v1226, %v933
        %v1230 = vunpack.c.l.b16 %v1224
        %v1231 = vunpack.c.l.b16 %v1225
        %v1232 = vpack.c.b16 %v1231, %v1230
        %v1235 = vsel %vm382, %v1227, 0
        %1237 = vmatprep.subr.bf16.mxu0 0
        %1238 = vmatpush1.bf16.msra.mxu0 %v1232
        %1239 = vmatprep.subr.bf16.mxu0 0
        %1240 = vmatpush1.bf16.msra.mxu0 0
        %1241 = vmatprep.subr.bf16.mxu0 0
        %1242 = vmatpush1.bf16.msra.mxu0 0
        %1243 = vmatprep.subr.bf16.mxu0 0
        %1244 = vmatpush1.bf16.msra.mxu0 0
        %1245 = vmatprep.subr.bf16.mxu0 0
        %1246 = vmatpush1.bf16.msra.mxu0 0
        %1247 = vmatprep.subr.bf16.mxu0 0
        %1248 = vmatpush1.bf16.msra.mxu0 0
        %1249 = vmatprep.subr.bf16.mxu0 0
        %1250 = vmatpush1.bf16.msra.mxu0 0
        %1251 = vmatprep.subr.bf16.mxu0 0
        %1252 = vmatpush1.bf16.msra.mxu0 0
        %1253 = vmatprep.subr.bf16.mxu0 0
        %1254 = vmatpush1.bf16.msra.mxu0 0
        %1255 = vmatprep.subr.bf16.mxu0 0
        %1256 = vmatpush1.bf16.msra.mxu0 0
        %1257 = vmatprep.subr.bf16.mxu0 0
        %1258 = vmatpush1.bf16.msra.mxu0 0
        %1259 = vmatprep.subr.bf16.mxu0 0
        %1260 = vmatpush1.bf16.msra.mxu0 0
        %1261 = vmatprep.subr.bf16.mxu0 0
        %1262 = vmatpush1.bf16.msra.mxu0 0
        %1263 = vmatprep.subr.bf16.mxu0 0
        %1264 = vmatpush1.bf16.msra.mxu0 0
        %1265 = vmatprep.subr.bf16.mxu0 0
        %1266 = vmatpush1.bf16.msra.mxu0 0
        %1267 = vmatprep.subr.bf16.mxu0 0
        %1268 = vmatpush1.bf16.msra.mxu0 0
        %1269 = vmatprep.mubr.bf16.mxu0 0
        %1270 = vmatmul.mubr.bf16.gmra.mrb[0].mxu0 %v631
        %v1271 = vpop.f32.mrb[0].mxu0
        %v1272 = vadd.f32 0.0, %v1271
        %v1273 = vpop.f32.mrb[0].mxu0
        %v1274 = vpop.f32.mrb[0].mxu0
        %v1275 = vadd.f32 0.0, %v1274
        %v1276 = vpop.f32.mrb[0].mxu0
        %1277 = vmatprep.mubr.bf16.mxu0 0
        %1278 = vmatmul.mubr.bf16.gmra.mrb[0].mxu0 %v634
        %v1279 = vpop.f32.mrb[0].mxu0
        %v1280 = vadd.f32 0.0, %v1279
        %v1281 = vpop.f32.mrb[0].mxu0
        %v1282 = vpop.f32.mrb[0].mxu0
        %v1283 = vadd.f32 0.0, %v1282
        %v1284 = vpop.f32.mrb[0].mxu0
        %1285 = vmatprep.mubr.bf16.mxu0 0
        %1286 = vmatmul.mubr.bf16.gmra.mrb[0].mxu0 %v637
        %v1287 = vpop.f32.mrb[0].mxu0
        %v1288 = vadd.f32 0.0, %v1287
        %v1289 = vpop.f32.mrb[0].mxu0
        %v1290 = vpop.f32.mrb[0].mxu0
        %v1291 = vadd.f32 0.0, %v1290
        %v1292 = vpop.f32.mrb[0].mxu0
        %1293 = vmatprep.mubr.bf16.mxu0 0
        %1294 = vmatmul.mubr.bf16.gmra.mrb[0].mxu0 %v1235
        %v1295 = vpop.f32.mrb[0].mxu0
        %v1296 = vadd.f32 0.0, %v1295
        %v1297 = vpop.f32.mrb[0].mxu0
        %v1298 = vpop.f32.mrb[0].mxu0
        %v1299 = vadd.f32 0.0, %v1298
        %v1300 = vpop.f32.mrb[0].mxu0
        %1301 = vdwg.mxu0
        %v1302 = vadd.f32 %v1210, %v1272
        %v1303 = vadd.f32 %v1211, %v1275
        %v1304 = vadd.f32 %v1212, %v1280
        %v1305 = vadd.f32 %v1213, %v1283
        %v1306 = vadd.f32 %v1214, %v1288
        %v1307 = vadd.f32 %v1215, %v1291
        %v1308 = vadd.f32 %v1216, %v1296
        %v1309 = vadd.f32 %v1217, %v1299
        %v1310 = vadd.f32 %v1302, %v1303
        %v1311 = vadd.f32 %v1310, %v1304
        %v1312 = vadd.f32 %v1311, %v1305
        %v1313 = vadd.f32 %v1312, %v1306
        %v1314 = vadd.f32 %v1313, %v1307
        %v1315 = vadd.f32 %v1314, %v1308
        %v1316 = vadd.f32 %v1315, %v1309
        %v1317 = vrot.slane %v1316, 4
        %v1318 = vadd.f32 %v1316, %v1317
        %v1319 = vrot.slane %v1318, 2
        %v1320 = vadd.f32 %v1318, %v1319
        %v1321 = vrot.slane %v1320, 1
        %v1322 = vadd.f32 %v1320, %v1321
        %v1323 = vrcp.pop 64.0
        %v1324 = vmul.f32 %v1322, %v1323
        %v1325 = vmul.f32 %v1302, %v1302
        %v1326 = vmul.f32 %v1303, %v1303
        %v1327 = vmul.f32 %v1304, %v1304
        %v1328 = vmul.f32 %v1305, %v1305
        %v1329 = vmul.f32 %v1306, %v1306
        %v1330 = vmul.f32 %v1307, %v1307
        %v1331 = vmul.f32 %v1308, %v1308
        %v1332 = vmul.f32 %v1309, %v1309
        %v1333 = vadd.f32 %v1325, %v1326
        %v1334 = vadd.f32 %v1333, %v1327
        %v1335 = vadd.f32 %v1334, %v1328
        %v1336 = vadd.f32 %v1335, %v1329
        %v1337 = vadd.f32 %v1336, %v1330
        %v1338 = vadd.f32 %v1337, %v1331
        %v1339 = vadd.f32 %v1338, %v1332
        %v1340 = vrot.slane %v1339, 4
        %v1341 = vadd.f32 %v1339, %v1340
        %v1342 = vrot.slane %v1341, 2
        %v1343 = vadd.f32 %v1341, %v1342
        %v1344 = vrot.slane %v1343, 1
        %v1345 = vadd.f32 %v1343, %v1344
        %v1346 = vmul.f32 %v1345, %v1323
        %v1347 = vmul.f32 %v1324, %v1324
        %v1348 = vsub.f32 %v1346, %v1347
        %v1349 = vadd.f32 %v1348, 1e-05
        %v1350 = vrsqrt.pop %v1349
        %v1351 = vsub.f32 %v1302, %v1324
        %v1352 = vsub.f32 %v1303, %v1324
        %v1353 = vsub.f32 %v1304, %v1324
        %v1354 = vsub.f32 %v1305, %v1324
        %v1355 = vsub.f32 %v1306, %v1324
        %v1356 = vsub.f32 %v1307, %v1324
        %v1357 = vsub.f32 %v1308, %v1324
        %v1358 = vsub.f32 %v1309, %v1324
        %v1359 = vmul.f32 %v1351, %v1350
        %v1360 = vmul.f32 %v1352, %v1350
        %v1361 = vmul.f32 %v1353, %v1350
        %v1362 = vmul.f32 %v1354, %v1350
        %v1363 = vmul.f32 %v1355, %v1350
        %v1364 = vmul.f32 %v1356, %v1350
        %v1365 = vmul.f32 %v1357, %v1350
        %v1366 = vmul.f32 %v1358, %v1350
        %v1367 = vld [vmem:[%s2] sm:$0x1]
        %v1369 = vlaneseq
        %v1370 = vshrl.u32 %v1369, 7
        %v1371 = vsub.s32 0, %v1370
        %v1372 = vrot.slane %v1367, %v1371
        %v1374 = vmul.f32 %v1359, %v1372
        %v1375 = vmul.f32 %v1360, %v1372
        %v1376 = vmul.f32 %v1361, %v1372
        %v1377 = vmul.f32 %v1362, %v1372
        %v1378 = vmul.f32 %v1363, %v1372
        %v1379 = vmul.f32 %v1364, %v1372
        %v1380 = vmul.f32 %v1365, %v1372
        %v1381 = vmul.f32 %v1366, %v1372
        %v1382 = vld [vmem:[%s3] sm:$0x1]
        %v1384 = vlaneseq
        %v1385 = vshrl.u32 %v1384, 7
        %v1386 = vsub.s32 0, %v1385
        %v1387 = vrot.slane %v1382, %v1386
        %v1389 = vadd.f32 %v1374, %v1387
        %v1390 = vadd.f32 %v1375, %v1387
        %v1391 = vadd.f32 %v1376, %v1387
        %v1392 = vadd.f32 %v1377, %v1387
        %v1393 = vadd.f32 %v1378, %v1387
        %v1394 = vadd.f32 %v1379, %v1387
        %v1395 = vadd.f32 %v1380, %v1387
        %v1396 = vadd.f32 %v1381, %v1387
        %v1397 = vmax.f32 %v1389, 0.0
        %v1398 = vmax.f32 %v1390, 0.0
        %v1399 = vmax.f32 %v1391, 0.0
        %v1400 = vmax.f32 %v1392, 0.0
        %v1401 = vmax.f32 %v1393, 0.0
        %v1402 = vmax.f32 %v1394, 0.0
        %v1403 = vmax.f32 %v1395, 0.0
        %v1404 = vmax.f32 %v1396, 0.0
        %v1405 = vpack.c.bf16 %v1397, %v1397
        %v1406 = vpack.c.bf16 %v1398, %v1398
        %v1407 = vpack.c.bf16 %v1399, %v1399
        %v1408 = vpack.c.bf16 %v1400, %v1400
        %v1409 = vpack.c.bf16 %v1401, %v1401
        %v1410 = vpack.c.bf16 %v1402, %v1402
        %v1411 = vpack.c.bf16 %v1403, %v1403
        %v1412 = vpack.c.bf16 %v1404, %v1404
        %v1413 = vld [vmem:[%s4] sm:$0xf]
        %v1414 = vld [vmem:[%s4 + $0x4] sm:$0xf]
        %v1417 = vunpack.c.l.b16 %v1413
        %v1418 = vunpack.c.l.b16 %v1414
        %v1419 = vpack.c.b16 %v1418, %v1417
        %vm1420 = vcmask 64512
        %v1422 = vsel %vm1420, %v1419, 0
        %vm1424 = vcmask 1043456
        %v1426 = vsel %vm1424, %v1405, 0
        %1428 = vmatprep.subr.bf16.mxu0 0
        %1429 = vmatpush1.bf16.msra.mxu0 %v1426
        %1430 = vmatprep.subr.bf16.mxu0 0
        %1431 = vmatpush1.bf16.msra.mxu0 0
        %1432 = vmatprep.subr.bf16.mxu0 0
        %1433 = vmatpush1.bf16.msra.mxu0 0
        %1434 = vmatprep.subr.bf16.mxu0 0
        %1435 = vmatpush1.bf16.msra.mxu0 0
        %1436 = vmatprep.subr.bf16.mxu0 0
        %1437 = vmatpush1.bf16.msra.mxu0 0
        %1438 = vmatprep.subr.bf16.mxu0 0
        %1439 = vmatpush1.bf16.msra.mxu0 0
        %1440 = vmatprep.subr.bf16.mxu0 0
        %1441 = vmatpush1.bf16.msra.mxu0 0
        %1442 = vmatprep.subr.bf16.mxu0 0
        %1443 = vmatpush1.bf16.msra.mxu0 0
        %1444 = vmatprep.subr.bf16.mxu0 0
        %1445 = vmatpush1.bf16.msra.mxu0 0
        %1446 = vmatprep.subr.bf16.mxu0 0
        %1447 = vmatpush1.bf16.msra.mxu0 0
        %1448 = vmatprep.subr.bf16.mxu0 0
        %1449 = vmatpush1.bf16.msra.mxu0 0
        %1450 = vmatprep.subr.bf16.mxu0 0
        %1451 = vmatpush1.bf16.msra.mxu0 0
        %1452 = vmatprep.subr.bf16.mxu0 0
        %1453 = vmatpush1.bf16.msra.mxu0 0
        %1454 = vmatprep.subr.bf16.mxu0 0
        %1455 = vmatpush1.bf16.msra.mxu0 0
        %1456 = vmatprep.subr.bf16.mxu0 0
        %1457 = vmatpush1.bf16.msra.mxu0 0
        %1458 = vmatprep.subr.bf16.mxu0 0
        %1459 = vmatpush1.bf16.msra.mxu0 0
        %1460 = vmatprep.mubr.bf16.mxu0 0
        %1461 = vmatmul.mubr.bf16.gmra.mrb[0].mxu0 %v1422
        %v1462 = vpop.f32.mrb[0].mxu0
        %v1463 = vadd.f32 0.0, %v1462
        %v1464 = vpop.f32.mrb[0].mxu0
        %v1465 = vpop.f32.mrb[0].mxu0
        %v1466 = vadd.f32 0.0, %v1465
        %v1467 = vpop.f32.mrb[0].mxu0
        %1468 = vdwg.mxu0
        %v1470 = vsel %vm1424, %v1406, 0
        %1472 = vmatprep.subr.bf16.mxu0 0
        %1473 = vmatpush1.bf16.msra.mxu0 %v1470
        %1474 = vmatprep.subr.bf16.mxu0 0
        %1475 = vmatpush1.bf16.msra.mxu0 0
        %1476 = vmatprep.subr.bf16.mxu0 0
        %1477 = vmatpush1.bf16.msra.mxu0 0
        %1478 = vmatprep.subr.bf16.mxu0 0
        %1479 = vmatpush1.bf16.msra.mxu0 0
        %1480 = vmatprep.subr.bf16.mxu0 0
        %1481 = vmatpush1.bf16.msra.mxu0 0
        %1482 = vmatprep.subr.bf16.mxu0 0
        %1483 = vmatpush1.bf16.msra.mxu0 0
        %1484 = vmatprep.subr.bf16.mxu0 0
        %1485 = vmatpush1.bf16.msra.mxu0 0
        %1486 = vmatprep.subr.bf16.mxu0 0
        %1487 = vmatpush1.bf16.msra.mxu0 0
        %1488 = vmatprep.subr.bf16.mxu0 0
        %1489 = vmatpush1.bf16.msra.mxu0 0
        %1490 = vmatprep.subr.bf16.mxu0 0
        %1491 = vmatpush1.bf16.msra.mxu0 0
        %1492 = vmatprep.subr.bf16.mxu0 0
        %1493 = vmatpush1.bf16.msra.mxu0 0
        %1494 = vmatprep.subr.bf16.mxu0 0
        %1495 = vmatpush1.bf16.msra.mxu0 0
        %1496 = vmatprep.subr.bf16.mxu0 0
        %1497 = vmatpush1.bf16.msra.mxu0 0
        %1498 = vmatprep.subr.bf16.mxu0 0
        %1499 = vmatpush1.bf16.msra.mxu0 0
        %1500 = vmatprep.subr.bf16.mxu0 0
        %1501 = vmatpush1.bf16.msra.mxu0 0
        %1502 = vmatprep.subr.bf16.mxu0 0
        %1503 = vmatpush1.bf16.msra.mxu0 0
        %1504 = vmatprep.mubr.bf16.mxu0 0
        %1505 = vmatmul.mubr.bf16.gmra.mrb[0].mxu0 %v1422
        %v1506 = vpop.f32.mrb[0].mxu0
        %v1507 = vadd.f32 0.0, %v1506
        %v1508 = vpop.f32.mrb[0].mxu0
        %v1509 = vpop.f32.mrb[0].mxu0
        %v1510 = vadd.f32 0.0, %v1509
        %v1511 = vpop.f32.mrb[0].mxu0
        %1512 = vdwg.mxu0
        %v1514 = vsel %vm1424, %v1407, 0
        %1516 = vmatprep.subr.bf16.mxu0 0
        %1517 = vmatpush1.bf16.msra.mxu0 %v1514
        %1518 = vmatprep.subr.bf16.mxu0 0
        %1519 = vmatpush1.bf16.msra.mxu0 0
        %1520 = vmatprep.subr.bf16.mxu0 0
        %1521 = vmatpush1.bf16.msra.mxu0 0
        %1522 = vmatprep.subr.bf16.mxu0 0
        %1523 = vmatpush1.bf16.msra.mxu0 0
        %1524 = vmatprep.subr.bf16.mxu0 0
        %1525 = vmatpush1.bf16.msra.mxu0 0
        %1526 = vmatprep.subr.bf16.mxu0 0
        %1527 = vmatpush1.bf16.msra.mxu0 0
        %1528 = vmatprep.subr.bf16.mxu0 0
        %1529 = vmatpush1.bf16.msra.mxu0 0
        %1530 = vmatprep.subr.bf16.mxu0 0
        %1531 = vmatpush1.bf16.msra.mxu0 0
        %1532 = vmatprep.subr.bf16.mxu0 0
        %1533 = vmatpush1.bf16.msra.mxu0 0
        %1534 = vmatprep.subr.bf16.mxu0 0
        %1535 = vmatpush1.bf16.msra.mxu0 0
        %1536 = vmatprep.subr.bf16.mxu0 0
        %1537 = vmatpush1.bf16.msra.mxu0 0
        %1538 = vmatprep.subr.bf16.mxu0 0
        %1539 = vmatpush1.bf16.msra.mxu0 0
        %1540 = vmatprep.subr.bf16.mxu0 0
        %1541 = vmatpush1.bf16.msra.mxu0 0
        %1542 = vmatprep.subr.bf16.mxu0 0
        %1543 = vmatpush1.bf16.msra.mxu0 0
        %1544 = vmatprep.subr.bf16.mxu0 0
        %1545 = vmatpush1.bf16.msra.mxu0 0
        %1546 = vmatprep.subr.bf16.mxu0 0
        %1547 = vmatpush1.bf16.msra.mxu0 0
        %1548 = vmatprep.mubr.bf16.mxu0 0
        %1549 = vmatmul.mubr.bf16.gmra.mrb[0].mxu0 %v1422
        %v1550 = vpop.f32.mrb[0].mxu0
        %v1551 = vadd.f32 0.0, %v1550
        %v1552 = vpop.f32.mrb[0].mxu0
        %v1553 = vpop.f32.mrb[0].mxu0
        %v1554 = vadd.f32 0.0, %v1553
        %v1555 = vpop.f32.mrb[0].mxu0
        %1556 = vdwg.mxu0
        %v1558 = vsel %vm1424, %v1408, 0
        %1560 = vmatprep.subr.bf16.mxu0 0
        %1561 = vmatpush1.bf16.msra.mxu0 %v1558
        %1562 = vmatprep.subr.bf16.mxu0 0
        %1563 = vmatpush1.bf16.msra.mxu0 0
        %1564 = vmatprep.subr.bf16.mxu0 0
        %1565 = vmatpush1.bf16.msra.mxu0 0
        %1566 = vmatprep.subr.bf16.mxu0 0
        %1567 = vmatpush1.bf16.msra.mxu0 0
        %1568 = vmatprep.subr.bf16.mxu0 0
        %1569 = vmatpush1.bf16.msra.mxu0 0
        %1570 = vmatprep.subr.bf16.mxu0 0
        %1571 = vmatpush1.bf16.msra.mxu0 0
        %1572 = vmatprep.subr.bf16.mxu0 0
        %1573 = vmatpush1.bf16.msra.mxu0 0
        %1574 = vmatprep.subr.bf16.mxu0 0
        %1575 = vmatpush1.bf16.msra.mxu0 0
        %1576 = vmatprep.subr.bf16.mxu0 0
        %1577 = vmatpush1.bf16.msra.mxu0 0
        %1578 = vmatprep.subr.bf16.mxu0 0
        %1579 = vmatpush1.bf16.msra.mxu0 0
        %1580 = vmatprep.subr.bf16.mxu0 0
        %1581 = vmatpush1.bf16.msra.mxu0 0
        %1582 = vmatprep.subr.bf16.mxu0 0
        %1583 = vmatpush1.bf16.msra.mxu0 0
        %1584 = vmatprep.subr.bf16.mxu0 0
        %1585 = vmatpush1.bf16.msra.mxu0 0
        %1586 = vmatprep.subr.bf16.mxu0 0
        %1587 = vmatpush1.bf16.msra.mxu0 0
        %1588 = vmatprep.subr.bf16.mxu0 0
        %1589 = vmatpush1.bf16.msra.mxu0 0
        %1590 = vmatprep.subr.bf16.mxu0 0
        %1591 = vmatpush1.bf16.msra.mxu0 0
        %1592 = vmatprep.mubr.bf16.mxu0 0
        %1593 = vmatmul.mubr.bf16.gmra.mrb[0].mxu0 %v1422
        %v1594 = vpop.f32.mrb[0].mxu0
        %v1595 = vadd.f32 0.0, %v1594
        %v1596 = vpop.f32.mrb[0].mxu0
        %v1597 = vpop.f32.mrb[0].mxu0
        %v1598 = vadd.f32 0.0, %v1597
        %v1599 = vpop.f32.mrb[0].mxu0
        %1600 = vdwg.mxu0
        %v1602 = vsel %vm1424, %v1409, 0
        %1604 = vmatprep.subr.bf16.mxu0 0
        %1605 = vmatpush1.bf16.msra.mxu0 %v1602
        %1606 = vmatprep.subr.bf16.mxu0 0
        %1607 = vmatpush1.bf16.msra.mxu0 0
        %1608 = vmatprep.subr.bf16.mxu0 0
        %1609 = vmatpush1.bf16.msra.mxu0 0
        %1610 = vmatprep.subr.bf16.mxu0 0
        %1611 = vmatpush1.bf16.msra.mxu0 0
        %1612 = vmatprep.subr.bf16.mxu0 0
        %1613 = vmatpush1.bf16.msra.mxu0 0
        %1614 = vmatprep.subr.bf16.mxu0 0
        %1615 = vmatpush1.bf16.msra.mxu0 0
        %1616 = vmatprep.subr.bf16.mxu0 0
        %1617 = vmatpush1.bf16.msra.mxu0 0
        %1618 = vmatprep.subr.bf16.mxu0 0
        %1619 = vmatpush1.bf16.msra.mxu0 0
        %1620 = vmatprep.subr.bf16.mxu0 0
        %1621 = vmatpush1.bf16.msra.mxu0 0
        %1622 = vmatprep.subr.bf16.mxu0 0
        %1623 = vmatpush1.bf16.msra.mxu0 0
        %1624 = vmatprep.subr.bf16.mxu0 0
        %1625 = vmatpush1.bf16.msra.mxu0 0
        %1626 = vmatprep.subr.bf16.mxu0 0
        %1627 = vmatpush1.bf16.msra.mxu0 0
        %1628 = vmatprep.subr.bf16.mxu0 0
        %1629 = vmatpush1.bf16.msra.mxu0 0
        %1630 = vmatprep.subr.bf16.mxu0 0
        %1631 = vmatpush1.bf16.msra.mxu0 0
        %1632 = vmatprep.subr.bf16.mxu0 0
        %1633 = vmatpush1.bf16.msra.mxu0 0
        %1634 = vmatprep.subr.bf16.mxu0 0
        %1635 = vmatpush1.bf16.msra.mxu0 0
        %1636 = vmatprep.mubr.bf16.mxu0 0
        %1637 = vmatmul.mubr.bf16.gmra.mrb[0].mxu0 %v1422
        %v1638 = vpop.f32.mrb[0].mxu0
        %v1639 = vadd.f32 0.0, %v1638
        %v1640 = vpop.f32.mrb[0].mxu0
        %v1641 = vpop.f32.mrb[0].mxu0
        %v1642 = vadd.f32 0.0, %v1641
        %v1643 = vpop.f32.mrb[0].mxu0
        %1644 = vdwg.mxu0
        %v1646 = vsel %vm1424, %v1410, 0
        %1648 = vmatprep.subr.bf16.mxu0 0
        %1649 = vmatpush1.bf16.msra.mxu0 %v1646
        %1650 = vmatprep.subr.bf16.mxu0 0
        %1651 = vmatpush1.bf16.msra.mxu0 0
        %1652 = vmatprep.subr.bf16.mxu0 0
        %1653 = vmatpush1.bf16.msra.mxu0 0
        %1654 = vmatprep.subr.bf16.mxu0 0
        %1655 = vmatpush1.bf16.msra.mxu0 0
        %1656 = vmatprep.subr.bf16.mxu0 0
        %1657 = vmatpush1.bf16.msra.mxu0 0
        %1658 = vmatprep.subr.bf16.mxu0 0
        %1659 = vmatpush1.bf16.msra.mxu0 0
        %1660 = vmatprep.subr.bf16.mxu0 0
        %1661 = vmatpush1.bf16.msra.mxu0 0
        %1662 = vmatprep.subr.bf16.mxu0 0
        %1663 = vmatpush1.bf16.msra.mxu0 0
        %1664 = vmatprep.subr.bf16.mxu0 0
        %1665 = vmatpush1.bf16.msra.mxu0 0
        %1666 = vmatprep.subr.bf16.mxu0 0
        %1667 = vmatpush1.bf16.msra.mxu0 0
        %1668 = vmatprep.subr.bf16.mxu0 0
        %1669 = vmatpush1.bf16.msra.mxu0 0
        %1670 = vmatprep.subr.bf16.mxu0 0
        %1671 = vmatpush1.bf16.msra.mxu0 0
        %1672 = vmatprep.subr.bf16.mxu0 0
        %1673 = vmatpush1.bf16.msra.mxu0 0
        %1674 = vmatprep.subr.bf16.mxu0 0
        %1675 = vmatpush1.bf16.msra.mxu0 0
        %1676 = vmatprep.subr.bf16.mxu0 0
        %1677 = vmatpush1.bf16.msra.mxu0 0
        %1678 = vmatprep.subr.bf16.mxu0 0
        %1679 = vmatpush1.bf16.msra.mxu0 0
        %1680 = vmatprep.mubr.bf16.mxu0 0
        %1681 = vmatmul.mubr.bf16.gmra.mrb[0].mxu0 %v1422
        %v1682 = vpop.f32.mrb[0].mxu0
        %v1683 = vadd.f32 0.0, %v1682
        %v1684 = vpop.f32.mrb[0].mxu0
        %v1685 = vpop.f32.mrb[0].mxu0
        %v1686 = vadd.f32 0.0, %v1685
        %v1687 = vpop.f32.mrb[0].mxu0
        %1688 = vdwg.mxu0
        %v1690 = vsel %vm1424, %v1411, 0
        %1692 = vmatprep.subr.bf16.mxu0 0
        %1693 = vmatpush1.bf16.msra.mxu0 %v1690
        %1694 = vmatprep.subr.bf16.mxu0 0
        %1695 = vmatpush1.bf16.msra.mxu0 0
        %1696 = vmatprep.subr.bf16.mxu0 0
        %1697 = vmatpush1.bf16.msra.mxu0 0
        %1698 = vmatprep.subr.bf16.mxu0 0
        %1699 = vmatpush1.bf16.msra.mxu0 0
        %1700 = vmatprep.subr.bf16.mxu0 0
        %1701 = vmatpush1.bf16.msra.mxu0 0
        %1702 = vmatprep.subr.bf16.mxu0 0
        %1703 = vmatpush1.bf16.msra.mxu0 0
        %1704 = vmatprep.subr.bf16.mxu0 0
        %1705 = vmatpush1.bf16.msra.mxu0 0
        %1706 = vmatprep.subr.bf16.mxu0 0
        %1707 = vmatpush1.bf16.msra.mxu0 0
        %1708 = vmatprep.subr.bf16.mxu0 0
        %1709 = vmatpush1.bf16.msra.mxu0 0
        %1710 = vmatprep.subr.bf16.mxu0 0
        %1711 = vmatpush1.bf16.msra.mxu0 0
        %1712 = vmatprep.subr.bf16.mxu0 0
        %1713 = vmatpush1.bf16.msra.mxu0 0
        %1714 = vmatprep.subr.bf16.mxu0 0
        %1715 = vmatpush1.bf16.msra.mxu0 0
        %1716 = vmatprep.subr.bf16.mxu0 0
        %1717 = vmatpush1.bf16.msra.mxu0 0
        %1718 = vmatprep.subr.bf16.mxu0 0
        %1719 = vmatpush1.bf16.msra.mxu0 0
        %1720 = vmatprep.subr.bf16.mxu0 0
        %1721 = vmatpush1.bf16.msra.mxu0 0
        %1722 = vmatprep.subr.bf16.mxu0 0
        %1723 = vmatpush1.bf16.msra.mxu0 0
        %1724 = vmatprep.mubr.bf16.mxu0 0
        %1725 = vmatmul.mubr.bf16.gmra.mrb[0].mxu0 %v1422
        %v1726 = vpop.f32.mrb[0].mxu0
        %v1727 = vadd.f32 0.0, %v1726
        %v1728 = vpop.f32.mrb[0].mxu0
        %v1729 = vpop.f32.mrb[0].mxu0
        %v1730 = vadd.f32 0.0, %v1729
        %v1731 = vpop.f32.mrb[0].mxu0
        %1732 = vdwg.mxu0
        %v1734 = vsel %vm1424, %v1412, 0
        %1736 = vmatprep.subr.bf16.mxu0 0
        %1737 = vmatpush1.bf16.msra.mxu0 %v1734
        %1738 = vmatprep.subr.bf16.mxu0 0
        %1739 = vmatpush1.bf16.msra.mxu0 0
        %1740 = vmatprep.subr.bf16.mxu0 0
        %1741 = vmatpush1.bf16.msra.mxu0 0
        %1742 = vmatprep.subr.bf16.mxu0 0
        %1743 = vmatpush1.bf16.msra.mxu0 0
        %1744 = vmatprep.subr.bf16.mxu0 0
        %1745 = vmatpush1.bf16.msra.mxu0 0
        %1746 = vmatprep.subr.bf16.mxu0 0
        %1747 = vmatpush1.bf16.msra.mxu0 0
        %1748 = vmatprep.subr.bf16.mxu0 0
        %1749 = vmatpush1.bf16.msra.mxu0 0
        %1750 = vmatprep.subr.bf16.mxu0 0
        %1751 = vmatpush1.bf16.msra.mxu0 0
        %1752 = vmatprep.subr.bf16.mxu0 0
        %1753 = vmatpush1.bf16.msra.mxu0 0
        %1754 = vmatprep.subr.bf16.mxu0 0
        %1755 = vmatpush1.bf16.msra.mxu0 0
        %1756 = vmatprep.subr.bf16.mxu0 0
        %1757 = vmatpush1.bf16.msra.mxu0 0
        %1758 = vmatprep.subr.bf16.mxu0 0
        %1759 = vmatpush1.bf16.msra.mxu0 0
        %1760 = vmatprep.subr.bf16.mxu0 0
        %1761 = vmatpush1.bf16.msra.mxu0 0
        %1762 = vmatprep.subr.bf16.mxu0 0
        %1763 = vmatpush1.bf16.msra.mxu0 0
        %1764 = vmatprep.subr.bf16.mxu0 0
        %1765 = vmatpush1.bf16.msra.mxu0 0
        %1766 = vmatprep.subr.bf16.mxu0 0
        %1767 = vmatpush1.bf16.msra.mxu0 0
        %1768 = vmatprep.mubr.bf16.mxu0 0
        %1769 = vmatmul.mubr.bf16.gmra.mrb[0].mxu0 %v1422
        %v1770 = vpop.f32.mrb[0].mxu0
        %v1771 = vadd.f32 0.0, %v1770
        %v1772 = vpop.f32.mrb[0].mxu0
        %v1773 = vpop.f32.mrb[0].mxu0
        %v1774 = vadd.f32 0.0, %v1773
        %v1775 = vpop.f32.mrb[0].mxu0
        %1776 = vdwg.mxu0
        %v1777 = vmul.f32 %v1507, 0.0
        %v1778 = vmul.f32 %v1510, 0.0
        %v1779 = vadd.f32 %v1463, %v1777
        %v1780 = vadd.f32 %v1466, %v1778
        %v1781 = vpack.c.bf16 %v1780, %v1779
        %v1783 = vunpack.c.l.b16 %v1781
        %v1784 = vunpack.c.h.b16 %v1781
        %v1785 = vpack.c.b16 %v1783, %v1783
        %v1786 = vpack.c.b16 %v1784, %v1784
        %1789 = vst [vmem:[%s217] sm:$0xf] %v1785
        %1790 = vst [vmem:[%s217 + $0x4] sm:$0xf] %v1786
        %v1791 = vmul.f32 %v1463, 0.53333336
        %v1792 = vmul.f32 %v1466, 0.53333336
        %v1793 = vmul.f32 %v1507, 0.46666667
        %v1794 = vmul.f32 %v1510, 0.46666667
        %v1795 = vadd.f32 %v1791, %v1793
        %v1796 = vadd.f32 %v1792, %v1794
        %v1797 = vpack.c.bf16 %v1796, %v1795
        %v1799 = vunpack.c.l.b16 %v1797
        %v1800 = vunpack.c.h.b16 %v1797
        %v1801 = vpack.c.b16 %v1799, %v1799
        %v1802 = vpack.c.b16 %v1800, %v1800
        %s1805 = scalar_lea.vmem %s217, 8 [#allocation2]
        %1806 = vst [vmem:[%s1805] sm:$0xf] %v1801
        %1807 = vst [vmem:[%s1805 + $0x4] sm:$0xf] %v1802
        %v1808 = vmul.f32 %v1463, 0.06666667
        %v1809 = vmul.f32 %v1466, 0.06666667
        %v1810 = vmul.f32 %v1507, 0.93333334
        %v1811 = vmul.f32 %v1510, 0.93333334
        %v1812 = vadd.f32 %v1808, %v1810
        %v1813 = vadd.f32 %v1809, %v1811
        %v1814 = vpack.c.bf16 %v1813, %v1812
        %v1816 = vunpack.c.l.b16 %v1814
        %v1817 = vunpack.c.h.b16 %v1814
        %v1818 = vpack.c.b16 %v1816, %v1816
        %v1819 = vpack.c.b16 %v1817, %v1817
        %s1822 = scalar_lea.vmem %s217, 16 [#allocation2]
        %1823 = vst [vmem:[%s1822] sm:$0xf] %v1818
        %1824 = vst [vmem:[%s1822 + $0x4] sm:$0xf] %v1819
        %v1825 = vmul.f32 %v1507, 0.6
        %v1826 = vmul.f32 %v1510, 0.6
        %v1827 = vmul.f32 %v1551, 0.4
        %v1828 = vmul.f32 %v1554, 0.4
        %v1829 = vadd.f32 %v1825, %v1827
        %v1830 = vadd.f32 %v1826, %v1828
        %v1831 = vpack.c.bf16 %v1830, %v1829
        %v1833 = vunpack.c.l.b16 %v1831
        %v1834 = vunpack.c.h.b16 %v1831
        %v1835 = vpack.c.b16 %v1833, %v1833
        %v1836 = vpack.c.b16 %v1834, %v1834
        %s1839 = scalar_lea.vmem %s217, 24 [#allocation2]
        %1840 = vst [vmem:[%s1839] sm:$0xf] %v1835
        %1841 = vst [vmem:[%s1839 + $0x4] sm:$0xf] %v1836
        %v1842 = vmul.f32 %v1507, 0.13333334
        %v1843 = vmul.f32 %v1510, 0.13333334
        %v1844 = vmul.f32 %v1551, 0.8666667
        %v1845 = vmul.f32 %v1554, 0.8666667
        %v1846 = vadd.f32 %v1842, %v1844
        %v1847 = vadd.f32 %v1843, %v1845
        %v1848 = vpack.c.bf16 %v1847, %v1846
        %v1850 = vunpack.c.l.b16 %v1848
        %v1851 = vunpack.c.h.b16 %v1848
        %v1852 = vpack.c.b16 %v1850, %v1850
        %v1853 = vpack.c.b16 %v1851, %v1851
        %s1856 = scalar_lea.vmem %s217, 32 [#allocation2]
        %1857 = vst [vmem:[%s1856] sm:$0xf] %v1852
        %1858 = vst [vmem:[%s1856 + $0x4] sm:$0xf] %v1853
        %v1859 = vmul.f32 %v1551, 0.6666667
        %v1860 = vmul.f32 %v1554, 0.6666667
        %v1861 = vmul.f32 %v1595, 0.33333334
        %v1862 = vmul.f32 %v1598, 0.33333334
        %v1863 = vadd.f32 %v1859, %v1861
        %v1864 = vadd.f32 %v1860, %v1862
        %v1865 = vpack.c.bf16 %v1864, %v1863
        %v1867 = vunpack.c.l.b16 %v1865
        %v1868 = vunpack.c.h.b16 %v1865
        %v1869 = vpack.c.b16 %v1867, %v1867
        %v1870 = vpack.c.b16 %v1868, %v1868
        %s1873 = scalar_lea.vmem %s217, 40 [#allocation2]
        %1874 = vst [vmem:[%s1873] sm:$0xf] %v1869
        %1875 = vst [vmem:[%s1873 + $0x4] sm:$0xf] %v1870
        %v1876 = vmul.f32 %v1551, 0.2
        %v1877 = vmul.f32 %v1554, 0.2
        %v1878 = vmul.f32 %v1595, 0.8
        %v1879 = vmul.f32 %v1598, 0.8
        %v1880 = vadd.f32 %v1876, %v1878
        %v1881 = vadd.f32 %v1877, %v1879
        %v1882 = vpack.c.bf16 %v1881, %v1880
        %v1884 = vunpack.c.l.b16 %v1882
        %v1885 = vunpack.c.h.b16 %v1882
        %v1886 = vpack.c.b16 %v1884, %v1884
        %v1887 = vpack.c.b16 %v1885, %v1885
        %s1890 = scalar_lea.vmem %s217, 48 [#allocation2]
        %1891 = vst [vmem:[%s1890] sm:$0xf] %v1886
        %1892 = vst [vmem:[%s1890 + $0x4] sm:$0xf] %v1887
        %v1893 = vmul.f32 %v1595, 0.73333335
        %v1894 = vmul.f32 %v1598, 0.73333335
        %v1895 = vmul.f32 %v1639, 0.26666668
        %v1896 = vmul.f32 %v1642, 0.26666668
        %v1897 = vadd.f32 %v1893, %v1895
        %v1898 = vadd.f32 %v1894, %v1896
        %v1899 = vpack.c.bf16 %v1898, %v1897
        %v1901 = vunpack.c.l.b16 %v1899
        %v1902 = vunpack.c.h.b16 %v1899
        %v1903 = vpack.c.b16 %v1901, %v1901
        %v1904 = vpack.c.b16 %v1902, %v1902
        %s1907 = scalar_lea.vmem %s217, 56 [#allocation2]
        %1908 = vst [vmem:[%s1907] sm:$0xf] %v1903
        %1909 = vst [vmem:[%s1907 + $0x4] sm:$0xf] %v1904
        %v1910 = vmul.f32 %v1595, 0.26666668
        %v1911 = vmul.f32 %v1598, 0.26666668
        %v1912 = vmul.f32 %v1639, 0.73333335
        %v1913 = vmul.f32 %v1642, 0.73333335
        %v1914 = vadd.f32 %v1910, %v1912
        %v1915 = vadd.f32 %v1911, %v1913
        %v1916 = vpack.c.bf16 %v1915, %v1914
        %v1918 = vunpack.c.l.b16 %v1916
        %v1919 = vunpack.c.h.b16 %v1916
        %v1920 = vpack.c.b16 %v1918, %v1918
        %v1921 = vpack.c.b16 %v1919, %v1919
        %s1924 = scalar_lea.vmem %s217, 64 [#allocation2]
        %1925 = vst [vmem:[%s1924] sm:$0xf] %v1920
        %1926 = vst [vmem:[%s1924 + $0x4] sm:$0xf] %v1921
        %v1927 = vmul.f32 %v1639, 0.8
        %v1928 = vmul.f32 %v1642, 0.8
        %v1929 = vmul.f32 %v1683, 0.2
        %v1930 = vmul.f32 %v1686, 0.2
        %v1931 = vadd.f32 %v1927, %v1929
        %v1932 = vadd.f32 %v1928, %v1930
        %v1933 = vpack.c.bf16 %v1932, %v1931
        %v1935 = vunpack.c.l.b16 %v1933
        %v1936 = vunpack.c.h.b16 %v1933
        %v1937 = vpack.c.b16 %v1935, %v1935
        %v1938 = vpack.c.b16 %v1936, %v1936
        %s1941 = scalar_lea.vmem %s217, 72 [#allocation2]
        %1942 = vst [vmem:[%s1941] sm:$0xf] %v1937
        %1943 = vst [vmem:[%s1941 + $0x4] sm:$0xf] %v1938
        %v1944 = vmul.f32 %v1639, 0.33333334
        %v1945 = vmul.f32 %v1642, 0.33333334
        %v1946 = vmul.f32 %v1683, 0.6666667
        %v1947 = vmul.f32 %v1686, 0.6666667
        %v1948 = vadd.f32 %v1944, %v1946
        %v1949 = vadd.f32 %v1945, %v1947
        %v1950 = vpack.c.bf16 %v1949, %v1948
        %v1952 = vunpack.c.l.b16 %v1950
        %v1953 = vunpack.c.h.b16 %v1950
        %v1954 = vpack.c.b16 %v1952, %v1952
        %v1955 = vpack.c.b16 %v1953, %v1953
        %s1958 = scalar_lea.vmem %s217, 80 [#allocation2]
        %1959 = vst [vmem:[%s1958] sm:$0xf] %v1954
        %1960 = vst [vmem:[%s1958 + $0x4] sm:$0xf] %v1955
        %v1961 = vmul.f32 %v1683, 0.8666667
        %v1962 = vmul.f32 %v1686, 0.8666667
        %v1963 = vmul.f32 %v1727, 0.13333334
        %v1964 = vmul.f32 %v1730, 0.13333334
        %v1965 = vadd.f32 %v1961, %v1963
        %v1966 = vadd.f32 %v1962, %v1964
        %v1967 = vpack.c.bf16 %v1966, %v1965
        %v1969 = vunpack.c.l.b16 %v1967
        %v1970 = vunpack.c.h.b16 %v1967
        %v1971 = vpack.c.b16 %v1969, %v1969
        %v1972 = vpack.c.b16 %v1970, %v1970
        %s1975 = scalar_lea.vmem %s217, 88 [#allocation2]
        %1976 = vst [vmem:[%s1975] sm:$0xf] %v1971
        %1977 = vst [vmem:[%s1975 + $0x4] sm:$0xf] %v1972
        %v1978 = vmul.f32 %v1683, 0.4
        %v1979 = vmul.f32 %v1686, 0.4
        %v1980 = vmul.f32 %v1727, 0.6
        %v1981 = vmul.f32 %v1730, 0.6
        %v1982 = vadd.f32 %v1978, %v1980
        %v1983 = vadd.f32 %v1979, %v1981
        %v1984 = vpack.c.bf16 %v1983, %v1982
        %v1986 = vunpack.c.l.b16 %v1984
        %v1987 = vunpack.c.h.b16 %v1984
        %v1988 = vpack.c.b16 %v1986, %v1986
        %v1989 = vpack.c.b16 %v1987, %v1987
        %s1992 = scalar_lea.vmem %s217, 96 [#allocation2]
        %1993 = vst [vmem:[%s1992] sm:$0xf] %v1988
        %1994 = vst [vmem:[%s1992 + $0x4] sm:$0xf] %v1989
        %v1995 = vmul.f32 %v1727, 0.93333334
        %v1996 = vmul.f32 %v1730, 0.93333334
        %v1997 = vmul.f32 %v1771, 0.06666667
        %v1998 = vmul.f32 %v1774, 0.06666667
        %v1999 = vadd.f32 %v1995, %v1997
        %v2000 = vadd.f32 %v1996, %v1998
        %v2001 = vpack.c.bf16 %v2000, %v1999
        %v2003 = vunpack.c.l.b16 %v2001
        %v2004 = vunpack.c.h.b16 %v2001
        %v2005 = vpack.c.b16 %v2003, %v2003
        %v2006 = vpack.c.b16 %v2004, %v2004
        %s2009 = scalar_lea.vmem %s217, 104 [#allocation2]
        %2010 = vst [vmem:[%s2009] sm:$0xf] %v2005
        %2011 = vst [vmem:[%s2009 + $0x4] sm:$0xf] %v2006
        %v2012 = vmul.f32 %v1727, 0.46666667
        %v2013 = vmul.f32 %v1730, 0.46666667
        %v2014 = vmul.f32 %v1771, 0.53333336
        %v2015 = vmul.f32 %v1774, 0.53333336
        %v2016 = vadd.f32 %v2012, %v2014
        %v2017 = vadd.f32 %v2013, %v2015
        %v2018 = vpack.c.bf16 %v2017, %v2016
        %v2020 = vunpack.c.l.b16 %v2018
        %v2021 = vunpack.c.h.b16 %v2018
        %v2022 = vpack.c.b16 %v2020, %v2020
        %v2023 = vpack.c.b16 %v2021, %v2021
        %s2026 = scalar_lea.vmem %s217, 112 [#allocation2]
        %2027 = vst [vmem:[%s2026] sm:$0xf] %v2022
        %2028 = vst [vmem:[%s2026 + $0x4] sm:$0xf] %v2023
        %v2029 = vmul.f32 %v1727, 0.0
        %v2030 = vmul.f32 %v1730, 0.0
        %v2031 = vadd.f32 %v2029, %v1771
        %v2032 = vadd.f32 %v2030, %v1774
        %v2033 = vpack.c.bf16 %v2032, %v2031
        %v2035 = vunpack.c.l.b16 %v2033
        %v2036 = vunpack.c.h.b16 %v2033
        %v2037 = vpack.c.b16 %v2035, %v2035
        %v2038 = vpack.c.b16 %v2036, %v2036
        %s2041 = scalar_lea.vmem %s217, 120 [#allocation2]
        %2042 = vst [vmem:[%s2041] sm:$0xf] %v2037
        %2043 = vst [vmem:[%s2041 + $0x4] sm:$0xf] %v2038
        %s2044 = sand.u32 %s137, 1
        %s2045 = scalar_lea.sflag [#allocation3], %s2044
        %s2046 = sand.u32 %s137, 1
        %s2047 = smul.addr %s2046, 128
        %s2048 = scalar_lea.vmem [#allocation2], %s2047
        // Predicated region
        $region41: #{tpu_custom_call.1} parent=39 // pred_check
          %p2049 = pneg %p147
        $region42: #{tpu_custom_call.1} parent=39 // pred_check_branch
          %2051 = sbr.rel (%p2049) target = $region44
        $region43: #{tpu_custom_call.1} parent=39 // pred_region
          %s2053 = ssub.s32 2048, 2048
          %2054 = vsyncadd %s2045, %s2053
          %s2055 = smul.addr %s19, 32
          %s2056 = smul.addr %s2055, 64
          %s2057 = scalar_lea.hbm %s5, %s2056
          %s2058 = sshll.u32 %s2048, 4
          %s2059 = int_to_ptr.vmem [resolvable:$true] %s2058
          %2064 = dma.vmem_to_hbm [thread:$0]  %s2059, 2048, %s2057, %s2045, 64, 64, 4
        $region44: #{tpu_custom_call.1} parent=39 // pred_fallthru
          _
      $region40: #{tpu_custom_call.1} parent=5 // pred_fallthru
        _
      %p2065 = scmp.le.s32.totalorder 2, %s14
      // Predicated region
      $region45: #{tpu_custom_call.1} parent=5 // pred_check
        %p2066 = pneg %p2065
      $region46: #{tpu_custom_call.1} parent=5 // pred_check_branch
        %2068 = sbr.rel (%p2066) target = $region48
      $region47: #{tpu_custom_call.1} parent=5 // pred_region
        %s2069 = ssub.s32 %s14, 2
        // Predicated region
        $region49: #{tpu_custom_call.1} parent=47 // pred_check
          %p2070 = pneg %p153
        $region50: #{tpu_custom_call.1} parent=47 // pred_check_branch
          %2072 = sbr.rel (%p2070) target = $region52
        $region51: #{tpu_custom_call.1} parent=47 // pred_region
          %s2073 = sand.u32 %s138, 1
          %s2074 = scalar_lea.sflag [#allocation3], %s2073
          %s2075 = sand.u32 %s138, 1
          %s2076 = smul.addr %s2075, 128
          %s2077 = scalar_lea.vmem [#allocation2], %s2076
          %2078 = dma.done %s2074, 2048
        $region52: #{tpu_custom_call.1} parent=47 // pred_fallthru
          _
      $region48: #{tpu_custom_call.1} parent=5 // pred_fallthru
        _
    $region6: #{tpu_custom_call.1} parent=1 // loop_footer
      %s18 = sadd.s32 1, %s14
    $region7: #{tpu_custom_call.1} parent=1 // loop_footer_branch
      %13 = sbr.rel target = $region3
    $region8: #{tpu_custom_call.1} parent=1 // loop_exit
      _
    %2079 = vsyncpa [#allocation3], 1
    %s2080 = scalar_lea.sflag [#allocation3], 1
    %2081 = vsyncpa %s2080, 1

</llo_original>
